<compile_context>
chip_gen: v7x
topology: tpu7x:2x2x1
jax: 0.10.0
libtpu: 0.0.40
codegen_flags: <defaults>
</compile_context>

<pallas_src>
from functools import partial

import jax
import jax.numpy as jnp
import numpy as np
from jax import lax
from jax.experimental import pallas as pl
from jax.experimental.pallas import tpu as pltpu

EPS = 1e-5
PREC = jax.lax.Precision.HIGHEST   # only used by the pure-JAX reference


def _vmem_specs(n):
    return [pl.BlockSpec(memory_space=pltpu.MemorySpace.VMEM) for _ in range(n)]


# ------------------------------ fused kernel --------------------------------
def _decoder_block_kernel(W_img,
                          x_ref, w1_ref, b1_ref, g1_ref, be1_ref,
                          w9_ref, bd_ref, g2_ref, be2_ref,
                          w3_ref, b3_ref, g3_ref, be3_ref,
                          mw_ref, mh_ref,
                          o_ref,
                          x1pad_ref, xbig_ref):
    Cin, M = x_ref.shape
    Cmid = w1_ref.shape[0]

    def bn_relu(h, g, b):
        # training-mode BatchNorm over the lane axis, centered two-pass, f32.
        cnt = h.shape[1]
        mean = jnp.sum(h, axis=1, keepdims=True) * (1.0 / cnt)
        d = h - mean
        var = jnp.sum(d * d, axis=1, keepdims=True) * (1.0 / cnt)
        return jnp.maximum(d * lax.rsqrt(var + EPS) * g + b, 0.0)

    # ---- conv1 (1x1) + BN1 + ReLU: lane-dense (Cmid, M) MXU matmul ----------
    h1 = jnp.dot(w1_ref[...], x_ref[...], preferred_element_type=jnp.float32)
    x1 = bn_relu(h1 + b1_ref[...], g1_ref[...], be1_ref[...])      # (Cmid, M) f32

    # ---- build the shifted deconv inputs in-kernel (zero-padded scratch) ----
    x1pad_ref[...] = jnp.zeros(x1pad_ref.shape, x1pad_ref.dtype)
    x1pad_ref[:, pl.ds(0, M)] = x1
    mw = mw_ref[...]                                   # 0/1 mask: w <  W-1
    mh = mh_ref[...]                                   # 0/1 mask: h <  H-1
    x_w = x1pad_ref[:, pl.ds(1, M)] * mw               # x[n,h,w+1]
    x_h = x1pad_ref[:, pl.ds(W_img, M)] * mh           # x[n,h+1,w]
    x_hw = x1pad_ref[:, pl.ds(W_img + 1, M)] * (mw * mh)  # x[n,h+1,w+1]

    # ---- assemble (9*Cmid, 4*M) operand: row blocks = taps, col blocks = parity
    xbig_ref[...] = jnp.zeros(xbig_ref.shape, xbig_ref.dtype)

    def put(tap, parity, val):
        xbig_ref[pl.ds(tap * Cmid, Cmid), pl.ds(parity * M, M)] = (
            val.astype(xbig_ref.dtype))

    # ConvTranspose2d(3x3, s=2, p=1, op=1) by output parity (tap = kh*3+kw):
    put(4, 0, x1)                         # out[2i  ,2j  ] = x   W[1,1]
    put(5, 1, x1)                         # out[2i  ,2j+1] = x   W[1,2]
    put(3, 1, x_w)                        #                + xw  W[1,0]
    put(7, 2, x1)                         # out[2i+1,2j  ] = x   W[2,1]
    put(1, 2, x_h)                        #                + xh  W[0,1]
    put(8, 3, x1)                         # out[2i+1,2j+1] = x   W[2,2]
    put(6, 3, x_w)                        #                + xw  W[2,0]
    put(2, 3, x_h)                        #                + xh  W[0,2]
    put(0, 3, x_hw)                       #                + xhw W[0,0]

    # ---- deconv: ONE fat MXU matmul over all taps & parities, then BN2+ReLU -
    y2 = jnp.dot(w9_ref[...], xbig_ref[...], preferred_element_type=jnp.float32)
    z2 = bn_relu(y2 + bd_ref[...], g2_ref[...], be2_ref[...])      # (Cmid, 4M)

    # ---- conv3 (1x1) + BN3 + ReLU, lane-dense single output slab ------------
    u3 = jnp.dot(w3_ref[...], z2.astype(jnp.bfloat16),
                 preferred_element_type=jnp.float32)
    o_ref[...] = bn_relu(u3 + b3_ref[...], g3_ref[...], be3_ref[...])


# ------------------------------- wrapper -------------------------------------
def decoder_block_forward(x_nchw, p):
    N, Cin, H, W = x_nchw.shape
    Cmid = p['w1'].shape[0]     # in_channels // 4
    Cout = p['w3'].shape[0]     # n_filters
    M = N * H * W

    # NCHW -> (C, M): spatial on the TPU lane axis (lane-dense everywhere).
    x_cm = jnp.transpose(x_nchw, (1, 0, 2, 3)).reshape(Cin, M).astype(jnp.bfloat16)

    col = lambda v: v.reshape(-1, 1).astype(jnp.float32)

    # conv1 / conv3 weights as (Cout, Cin) matrices acting on (C, M) slabs.
    w1 = p['w1'][:, :, 0, 0].astype(jnp.bfloat16)                   # (Cmid, Cin)
    w3 = p['w3'][:, :, 0, 0].astype(jnp.bfloat16)                   # (Cout, Cmid)
    # deconv weight (Cin, Cout, 3, 3) -> (Cout, 9*Cin), tap-major column blocks:
    # W9[co, tap*Cmid + ci] = wd[ci, co, kh, kw], tap = kh*3 + kw.
    w9 = jnp.transpose(p['wd'], (2, 3, 1, 0)).reshape(9, Cmid, Cmid)
    w9 = jnp.transpose(w9, (1, 0, 2)).reshape(Cmid, 9 * Cmid).astype(jnp.bfloat16)

    # Boundary masks for the in-kernel W/H shifts (tiny constants).
    m_idx = jnp.arange(M, dtype=jnp.int32)
    mask_w = (m_idx % W < W - 1).astype(jnp.float32).reshape(1, M)
    mask_h = ((m_idx // W) % H < H - 1).astype(jnp.float32).reshape(1, M)

    out_cm = pl.pallas_call(
        partial(_decoder_block_kernel, W),
        out_shape=jax.ShapeDtypeStruct((Cout, 4 * M), jnp.float32),
        in_specs=_vmem_specs(15),
        out_specs=pl.BlockSpec(memory_space=pltpu.MemorySpace.VMEM),
        scratch_shapes=[
            pltpu.VMEM((Cmid, M + W + 1), jnp.float32),     # zero-padded x1
            pltpu.VMEM((9 * Cmid, 4 * M), jnp.bfloat16),    # tap/parity operand
        ],
        compiler_params=pltpu.CompilerParams(vmem_limit_bytes=32 * 1024 * 1024),
    )(x_cm, w1, col(p['b1']), col(p['g1']), col(p['be1']),
      w9, col(p['bd']), col(p['g2']), col(p['be2']),
      w3, col(p['b3']), col(p['g3']), col(p['be3']),
      mask_w, mask_h)

    # (Cout, [ee|eo|oe|oo] * M) -> NCHW (N, Cout, 2H, 2W): pure layout glue.
    y = out_cm.reshape(Cout, 2, 2, N, H, W)
    y = jnp.transpose(y, (3, 0, 4, 1, 5, 2)).reshape(N, Cout, 2 * H, 2 * W)
    return y


# -------------------------- params / reference -------------------------------
def init_params(key, in_channels, n_filters):
    cmid = in_channels // 4
    ks = jax.random.split(key, 6)

    def u(k, shape, fan_in):
        bound = 1.0 / np.sqrt(fan_in)
        return jax.random.uniform(k, shape, jnp.float32, -bound, bound)

    return dict(
        w1=u(ks[0], (cmid, in_channels, 1, 1), in_channels),
        b1=u(ks[1], (cmid,), in_channels),
        wd=u(ks[2], (cmid, cmid, 3, 3), cmid * 9),
        bd=u(ks[3], (cmid,), cmid * 9),
        w3=u(ks[4], (n_filters, cmid, 1, 1), cmid),
        b3=u(ks[5], (n_filters,), cmid),
        g1=jnp.ones((cmid,), jnp.float32), be1=jnp.zeros((cmid,), jnp.float32),
        g2=jnp.ones((cmid,), jnp.float32), be2=jnp.zeros((cmid,), jnp.float32),
        g3=jnp.ones((n_filters,), jnp.float32),
        be3=jnp.zeros((n_filters,), jnp.float32),
    )


def reference_forward(x, p):
    # Pure-JAX f32/HIGHEST reference matching PyTorch (training-mode BatchNorm).
    def bn(h, g, b):
        mean = jnp.mean(h, axis=(0, 2, 3), keepdims=True)
        var = jnp.mean((h - mean) ** 2, axis=(0, 2, 3), keepdims=True)
        return ((h - mean) / jnp.sqrt(var + EPS) * g[None, :, None, None]
                + b[None, :, None, None])

    dn = ('NCHW', 'OIHW', 'NCHW')
    h = lax.conv_general_dilated(x, p['w1'], (1, 1), 'VALID',
                                 dimension_numbers=dn, precision=PREC)
    h = jax.nn.relu(bn(h + p['b1'][None, :, None, None], p['g1'], p['be1']))

    # ConvTranspose2d(3,3,s=2,p=1,op=1) == dilated conv with flipped kernel.
    wd_conv = jnp.transpose(jnp.flip(p['wd'], (2, 3)), (1, 0, 2, 3))
    h = lax.conv_general_dilated(h, wd_conv, (1, 1), [(1, 2), (1, 2)],
                                 lhs_dilation=(2, 2), dimension_numbers=dn,
                                 precision=PREC)
    h = jax.nn.relu(bn(h + p['bd'][None, :, None, None], p['g2'], p['be2']))

    h = lax.conv_general_dilated(h, p['w3'], (1, 1), 'VALID',
                                 dimension_numbers=dn, precision=PREC)
    h = jax.nn.relu(bn(h + p['b3'][None, :, None, None], p['g3'], p['be3']))
    return h


if __name__ == "__main__":
    key = jax.random.PRNGKey(0)
    kx, kp = jax.random.split(key)
    N, Cin, H, W = 2, 16, 16, 16
    n_filters = 8

    x = jax.random.normal(kx, (N, Cin, H, W), jnp.float32)
    params = init_params(kp, Cin, n_filters)

    out = jax.jit(decoder_block_forward)(x, params)
    out = jax.block_until_ready(out)
    assert out.shape == (N, n_filters, 2 * H, 2 * W), out.shape

    ref = reference_forward(x, params)
    # Tolerance sized for bf16 MXU operands (f32 accumulation) across 3 layers.
    np.testing.assert_allclose(np.asarray(out), np.asarray(ref),
                               rtol=5e-2, atol=5e-2)
    print("KERNEL_OK")
</pallas_src>

<mosaic_0001>
module attributes {stable_mosaic.version = 11 : i64} {
  func.func @_decoder_block_kernel(%arg0: memref<16x512xbf16, #tpu.memory_space<vmem>>, %arg1: memref<4x16xbf16, #tpu.memory_space<vmem>>, %arg2: memref<4x1xf32, #tpu.memory_space<vmem>>, %arg3: memref<4x1xf32, #tpu.memory_space<vmem>>, %arg4: memref<4x1xf32, #tpu.memory_space<vmem>>, %arg5: memref<4x36xbf16, #tpu.memory_space<vmem>>, %arg6: memref<4x1xf32, #tpu.memory_space<vmem>>, %arg7: memref<4x1xf32, #tpu.memory_space<vmem>>, %arg8: memref<4x1xf32, #tpu.memory_space<vmem>>, %arg9: memref<8x4xbf16, #tpu.memory_space<vmem>>, %arg10: memref<8x1xf32, #tpu.memory_space<vmem>>, %arg11: memref<8x1xf32, #tpu.memory_space<vmem>>, %arg12: memref<8x1xf32, #tpu.memory_space<vmem>>, %arg13: memref<1x512xf32, #tpu.memory_space<vmem>>, %arg14: memref<1x512xf32, #tpu.memory_space<vmem>>, %arg15: memref<8x2048xf32, #tpu.memory_space<vmem>>, %arg16: memref<4x529xf32, #tpu.memory_space<vmem>>, %arg17: memref<36x2048xbf16, #tpu.memory_space<vmem>>) attributes {dimension_semantics = [], scalar_prefetch = 0 : i64, scratch_operands = 2 : i64, tpu.core_type = #tpu.core_type<tc>} {
    %c0 = arith.constant 0 : index
    %c0_0 = arith.constant 0 : index
    %0 = vector.load %arg1[%c0, %c0_0] : memref<4x16xbf16, #tpu.memory_space<vmem>>, vector<4x16xbf16>
    %c0_1 = arith.constant 0 : index
    %c0_2 = arith.constant 0 : index
    %1 = vector.load %arg0[%c0_1, %c0_2] : memref<16x512xbf16, #tpu.memory_space<vmem>>, vector<16x512xbf16>
    %cst = arith.constant dense<0.000000e+00> : vector<4x512xf32>
    %2 = tpu.matmul %0, %1, %cst {dimension_numbers = #tpu.dot_dimension_numbers<[1], [0], [0], [1], [0, 0, 1, 1], [], []>} : vector<4x16xbf16>, vector<16x512xbf16>, vector<4x512xf32> -> vector<4x512xf32>
    %c0_3 = arith.constant 0 : index
    %c0_4 = arith.constant 0 : index
    %3 = vector.load %arg2[%c0_3, %c0_4] : memref<4x1xf32, #tpu.memory_space<vmem>>, vector<4x1xf32>
    %4 = vector.broadcast %3 : vector<4x1xf32> to vector<4x512xf32>
    %5 = arith.addf %2, %4 : vector<4x512xf32>
    %c0_5 = arith.constant 0 : index
    %c0_6 = arith.constant 0 : index
    %6 = vector.load %arg3[%c0_5, %c0_6] : memref<4x1xf32, #tpu.memory_space<vmem>>, vector<4x1xf32>
    %c0_7 = arith.constant 0 : index
    %c0_8 = arith.constant 0 : index
    %7 = vector.load %arg4[%c0_7, %c0_8] : memref<4x1xf32, #tpu.memory_space<vmem>>, vector<4x1xf32>
    %cst_9 = arith.constant dense<0.000000e+00> : vector<4xf32>
    %8 = vector.multi_reduction <add>, %5, %cst_9 [1] : vector<4x512xf32> to vector<4xf32>
    %9 = vector.shape_cast %8 : vector<4xf32> to vector<4x1xf32>
    %cst_10 = arith.constant 0.001953125 : f32
    %10 = vector.broadcast %cst_10 : f32 to vector<4x1xf32>
    %11 = arith.mulf %9, %10 : vector<4x1xf32>
    %12 = vector.broadcast %11 : vector<4x1xf32> to vector<4x512xf32>
    %13 = arith.subf %5, %12 : vector<4x512xf32>
    %14 = arith.mulf %13, %13 : vector<4x512xf32>
    %cst_11 = arith.constant dense<0.000000e+00> : vector<4xf32>
    %15 = vector.multi_reduction <add>, %14, %cst_11 [1] : vector<4x512xf32> to vector<4xf32>
    %16 = vector.shape_cast %15 : vector<4xf32> to vector<4x1xf32>
    %cst_12 = arith.constant 0.001953125 : f32
    %17 = vector.broadcast %cst_12 : f32 to vector<4x1xf32>
    %18 = arith.mulf %16, %17 : vector<4x1xf32>
    %cst_13 = arith.constant 9.99999974E-6 : f32
    %19 = vector.broadcast %cst_13 : f32 to vector<4x1xf32>
    %20 = arith.addf %18, %19 : vector<4x1xf32>
    %21 = math.rsqrt %20 : vector<4x1xf32>
    %22 = vector.broadcast %21 : vector<4x1xf32> to vector<4x512xf32>
    %23 = arith.mulf %13, %22 : vector<4x512xf32>
    %24 = vector.broadcast %6 : vector<4x1xf32> to vector<4x512xf32>
    %25 = arith.mulf %23, %24 : vector<4x512xf32>
    %26 = vector.broadcast %7 : vector<4x1xf32> to vector<4x512xf32>
    %27 = arith.addf %25, %26 : vector<4x512xf32>
    %cst_14 = arith.constant 0.000000e+00 : f32
    %28 = vector.broadcast %cst_14 : f32 to vector<4x512xf32>
    %29 = arith.maximumf %27, %28 : vector<4x512xf32>
    %cst_15 = arith.constant 0.000000e+00 : f32
    %30 = vector.broadcast %cst_15 : f32 to vector<4x529xf32>
    %c0_16 = arith.constant 0 : index
    %c0_17 = arith.constant 0 : index
    %31 = vector.load %arg16[%c0_16, %c0_17] : memref<4x529xf32, #tpu.memory_space<vmem>>, vector<4x529xf32>
    tpu.vector_store %arg16[%c0_16, %c0_17], %30 {strides = array<i32>} : memref<4x529xf32, #tpu.memory_space<vmem>>, vector<4x529xf32>,
    %c0_18 = arith.constant 0 : index
    %c0_19 = arith.constant 0 : index
    %32 = vector.load %arg16[%c0_18, %c0_19] : memref<4x529xf32, #tpu.memory_space<vmem>>, vector<4x512xf32>
    tpu.vector_store %arg16[%c0_18, %c0_19], %29 {strides = array<i32>} : memref<4x529xf32, #tpu.memory_space<vmem>>, vector<4x512xf32>,
    %c0_20 = arith.constant 0 : index
    %c0_21 = arith.constant 0 : index
    %33 = vector.load %arg13[%c0_20, %c0_21] : memref<1x512xf32, #tpu.memory_space<vmem>>, vector<1x512xf32>
    %c0_22 = arith.constant 0 : index
    %c0_23 = arith.constant 0 : index
    %34 = vector.load %arg14[%c0_22, %c0_23] : memref<1x512xf32, #tpu.memory_space<vmem>>, vector<1x512xf32>
    %c0_24 = arith.constant 0 : index
    %c1 = arith.constant 1 : index
    %35 = vector.load %arg16[%c0_24, %c1] : memref<4x529xf32, #tpu.memory_space<vmem>>, vector<4x512xf32>
    %36 = vector.broadcast %33 : vector<1x512xf32> to vector<4x512xf32>
    %37 = arith.mulf %35, %36 : vector<4x512xf32>
    %c0_25 = arith.constant 0 : index
    %c16 = arith.constant 16 : index
    %38 = vector.load %arg16[%c0_25, %c16] : memref<4x529xf32, #tpu.memory_space<vmem>>, vector<4x512xf32>
    %39 = vector.broadcast %34 : vector<1x512xf32> to vector<4x512xf32>
    %40 = arith.mulf %38, %39 : vector<4x512xf32>
    %c0_26 = arith.constant 0 : index
    %c17 = arith.constant 17 : index
    %41 = vector.load %arg16[%c0_26, %c17] : memref<4x529xf32, #tpu.memory_space<vmem>>, vector<4x512xf32>
    %42 = arith.mulf %33, %34 : vector<1x512xf32>
    %43 = vector.broadcast %42 : vector<1x512xf32> to vector<4x512xf32>
    %44 = arith.mulf %41, %43 : vector<4x512xf32>
    %cst_27 = arith.constant 0.000000e+00 : bf16
    %45 = vector.broadcast %cst_27 : bf16 to vector<36x2048xbf16>
    %c0_28 = arith.constant 0 : index
    %c0_29 = arith.constant 0 : index
    %46 = vector.load %arg17[%c0_28, %c0_29] : memref<36x2048xbf16, #tpu.memory_space<vmem>>, vector<36x2048xbf16>
    tpu.vector_store %arg17[%c0_28, %c0_29], %45 {strides = array<i32>} : memref<36x2048xbf16, #tpu.memory_space<vmem>>, vector<36x2048xbf16>,
    %47 = arith.truncf %29 : vector<4x512xf32> to vector<4x512xbf16>
    %c16_30 = arith.constant 16 : index
    %c0_31 = arith.constant 0 : index
    %48 = vector.load %arg17[%c16_30, %c0_31] : memref<36x2048xbf16, #tpu.memory_space<vmem>>, vector<4x512xbf16>
    tpu.vector_store %arg17[%c16_30, %c0_31], %47 {strides = array<i32>} : memref<36x2048xbf16, #tpu.memory_space<vmem>>, vector<4x512xbf16>,
    %49 = arith.truncf %29 : vector<4x512xf32> to vector<4x512xbf16>
    %c20 = arith.constant 20 : index
    %c512 = arith.constant 512 : index
    %50 = vector.load %arg17[%c20, %c512] : memref<36x2048xbf16, #tpu.memory_space<vmem>>, vector<4x512xbf16>
    tpu.vector_store %arg17[%c20, %c512], %49 {strides = array<i32>} : memref<36x2048xbf16, #tpu.memory_space<vmem>>, vector<4x512xbf16>,
    %51 = arith.truncf %37 : vector<4x512xf32> to vector<4x512xbf16>
    %c12 = arith.constant 12 : index
    %c512_32 = arith.constant 512 : index
    %52 = vector.load %arg17[%c12, %c512_32] : memref<36x2048xbf16, #tpu.memory_space<vmem>>, vector<4x512xbf16>
    tpu.vector_store %arg17[%c12, %c512_32], %51 {strides = array<i32>} : memref<36x2048xbf16, #tpu.memory_space<vmem>>, vector<4x512xbf16>,
    %53 = arith.truncf %29 : vector<4x512xf32> to vector<4x512xbf16>
    %c28 = arith.constant 28 : index
    %c1024 = arith.constant 1024 : index
    %54 = vector.load %arg17[%c28, %c1024] : memref<36x2048xbf16, #tpu.memory_space<vmem>>, vector<4x512xbf16>
    tpu.vector_store %arg17[%c28, %c1024], %53 {strides = array<i32>} : memref<36x2048xbf16, #tpu.memory_space<vmem>>, vector<4x512xbf16>,
    %55 = arith.truncf %40 : vector<4x512xf32> to vector<4x512xbf16>
    %c4 = arith.constant 4 : index
    %c1024_33 = arith.constant 1024 : index
    %56 = vector.load %arg17[%c4, %c1024_33] : memref<36x2048xbf16, #tpu.memory_space<vmem>>, vector<4x512xbf16>
    tpu.vector_store %arg17[%c4, %c1024_33], %55 {strides = array<i32>} : memref<36x2048xbf16, #tpu.memory_space<vmem>>, vector<4x512xbf16>,
    %57 = arith.truncf %29 : vector<4x512xf32> to vector<4x512xbf16>
    %c32 = arith.constant 32 : index
    %c1536 = arith.constant 1536 : index
    %58 = vector.load %arg17[%c32, %c1536] : memref<36x2048xbf16, #tpu.memory_space<vmem>>, vector<4x512xbf16>
    tpu.vector_store %arg17[%c32, %c1536], %57 {strides = array<i32>} : memref<36x2048xbf16, #tpu.memory_space<vmem>>, vector<4x512xbf16>,
    %59 = arith.truncf %37 : vector<4x512xf32> to vector<4x512xbf16>
    %c24 = arith.constant 24 : index
    %c1536_34 = arith.constant 1536 : index
    %60 = vector.load %arg17[%c24, %c1536_34] : memref<36x2048xbf16, #tpu.memory_space<vmem>>, vector<4x512xbf16>
    tpu.vector_store %arg17[%c24, %c1536_34], %59 {strides = array<i32>} : memref<36x2048xbf16, #tpu.memory_space<vmem>>, vector<4x512xbf16>,
    %61 = arith.truncf %40 : vector<4x512xf32> to vector<4x512xbf16>
    %c8 = arith.constant 8 : index
    %c1536_35 = arith.constant 1536 : index
    %62 = vector.load %arg17[%c8, %c1536_35] : memref<36x2048xbf16, #tpu.memory_space<vmem>>, vector<4x512xbf16>
    tpu.vector_store %arg17[%c8, %c1536_35], %61 {strides = array<i32>} : memref<36x2048xbf16, #tpu.memory_space<vmem>>, vector<4x512xbf16>,
    %63 = arith.truncf %44 : vector<4x512xf32> to vector<4x512xbf16>
    %c0_36 = arith.constant 0 : index
    %c1536_37 = arith.constant 1536 : index
    %64 = vector.load %arg17[%c0_36, %c1536_37] : memref<36x2048xbf16, #tpu.memory_space<vmem>>, vector<4x512xbf16>
    tpu.vector_store %arg17[%c0_36, %c1536_37], %63 {strides = array<i32>} : memref<36x2048xbf16, #tpu.memory_space<vmem>>, vector<4x512xbf16>,
    %c0_38 = arith.constant 0 : index
    %c0_39 = arith.constant 0 : index
    %65 = vector.load %arg5[%c0_38, %c0_39] : memref<4x36xbf16, #tpu.memory_space<vmem>>, vector<4x36xbf16>
    %c0_40 = arith.constant 0 : index
    %c0_41 = arith.constant 0 : index
    %66 = vector.load %arg17[%c0_40, %c0_41] : memref<36x2048xbf16, #tpu.memory_space<vmem>>, vector<36x2048xbf16>
    %cst_42 = arith.constant dense<0.000000e+00> : vector<4x2048xf32>
    %67 = tpu.matmul %65, %66, %cst_42 {dimension_numbers = #tpu.dot_dimension_numbers<[1], [0], [0], [1], [0, 0, 1, 1], [], []>} : vector<4x36xbf16>, vector<36x2048xbf16>, vector<4x2048xf32> -> vector<4x2048xf32>
    %c0_43 = arith.constant 0 : index
    %c0_44 = arith.constant 0 : index
    %68 = vector.load %arg6[%c0_43, %c0_44] : memref<4x1xf32, #tpu.memory_space<vmem>>, vector<4x1xf32>
    %69 = vector.broadcast %68 : vector<4x1xf32> to vector<4x2048xf32>
    %70 = arith.addf %67, %69 : vector<4x2048xf32>
    %c0_45 = arith.constant 0 : index
    %c0_46 = arith.constant 0 : index
    %71 = vector.load %arg7[%c0_45, %c0_46] : memref<4x1xf32, #tpu.memory_space<vmem>>, vector<4x1xf32>
    %c0_47 = arith.constant 0 : index
    %c0_48 = arith.constant 0 : index
    %72 = vector.load %arg8[%c0_47, %c0_48] : memref<4x1xf32, #tpu.memory_space<vmem>>, vector<4x1xf32>
    %cst_49 = arith.constant dense<0.000000e+00> : vector<4xf32>
    %73 = vector.multi_reduction <add>, %70, %cst_49 [1] : vector<4x2048xf32> to vector<4xf32>
    %74 = vector.shape_cast %73 : vector<4xf32> to vector<4x1xf32>
    %cst_50 = arith.constant 4.8828125E-4 : f32
    %75 = vector.broadcast %cst_50 : f32 to vector<4x1xf32>
    %76 = arith.mulf %74, %75 : vector<4x1xf32>
    %77 = vector.broadcast %76 : vector<4x1xf32> to vector<4x2048xf32>
    %78 = arith.subf %70, %77 : vector<4x2048xf32>
    %79 = arith.mulf %78, %78 : vector<4x2048xf32>
    %cst_51 = arith.constant dense<0.000000e+00> : vector<4xf32>
    %80 = vector.multi_reduction <add>, %79, %cst_51 [1] : vector<4x2048xf32> to vector<4xf32>
    %81 = vector.shape_cast %80 : vector<4xf32> to vector<4x1xf32>
    %cst_52 = arith.constant 4.8828125E-4 : f32
    %82 = vector.broadcast %cst_52 : f32 to vector<4x1xf32>
    %83 = arith.mulf %81, %82 : vector<4x1xf32>
    %cst_53 = arith.constant 9.99999974E-6 : f32
    %84 = vector.broadcast %cst_53 : f32 to vector<4x1xf32>
    %85 = arith.addf %83, %84 : vector<4x1xf32>
    %86 = math.rsqrt %85 : vector<4x1xf32>
    %87 = vector.broadcast %86 : vector<4x1xf32> to vector<4x2048xf32>
    %88 = arith.mulf %78, %87 : vector<4x2048xf32>
    %89 = vector.broadcast %71 : vector<4x1xf32> to vector<4x2048xf32>
    %90 = arith.mulf %88, %89 : vector<4x2048xf32>
    %91 = vector.broadcast %72 : vector<4x1xf32> to vector<4x2048xf32>
    %92 = arith.addf %90, %91 : vector<4x2048xf32>
    %cst_54 = arith.constant 0.000000e+00 : f32
    %93 = vector.broadcast %cst_54 : f32 to vector<4x2048xf32>
    %94 = arith.maximumf %92, %93 : vector<4x2048xf32>
    %c0_55 = arith.constant 0 : index
    %c0_56 = arith.constant 0 : index
    %95 = vector.load %arg9[%c0_55, %c0_56] : memref<8x4xbf16, #tpu.memory_space<vmem>>, vector<8x4xbf16>
    %96 = arith.truncf %94 : vector<4x2048xf32> to vector<4x2048xbf16>
    %cst_57 = arith.constant dense<0.000000e+00> : vector<8x2048xf32>
    %97 = tpu.matmul %95, %96, %cst_57 {dimension_numbers = #tpu.dot_dimension_numbers<[1], [0], [0], [1], [0, 0, 1, 1], [], []>} : vector<8x4xbf16>, vector<4x2048xbf16>, vector<8x2048xf32> -> vector<8x2048xf32>
    %c0_58 = arith.constant 0 : index
    %c0_59 = arith.constant 0 : index
    %98 = vector.load %arg10[%c0_58, %c0_59] : memref<8x1xf32, #tpu.memory_space<vmem>>, vector<8x1xf32>
    %99 = vector.broadcast %98 : vector<8x1xf32> to vector<8x2048xf32>
    %100 = arith.addf %97, %99 : vector<8x2048xf32>
    %c0_60 = arith.constant 0 : index
    %c0_61 = arith.constant 0 : index
    %101 = vector.load %arg11[%c0_60, %c0_61] : memref<8x1xf32, #tpu.memory_space<vmem>>, vector<8x1xf32>
    %c0_62 = arith.constant 0 : index
    %c0_63 = arith.constant 0 : index
    %102 = vector.load %arg12[%c0_62, %c0_63] : memref<8x1xf32, #tpu.memory_space<vmem>>, vector<8x1xf32>
    %cst_64 = arith.constant dense<0.000000e+00> : vector<8xf32>
    %103 = vector.multi_reduction <add>, %100, %cst_64 [1] : vector<8x2048xf32> to vector<8xf32>
    %104 = vector.shape_cast %103 : vector<8xf32> to vector<8x1xf32>
    %cst_65 = arith.constant 4.8828125E-4 : f32
    %105 = vector.broadcast %cst_65 : f32 to vector<8x1xf32>
    %106 = arith.mulf %104, %105 : vector<8x1xf32>
    %107 = vector.broadcast %106 : vector<8x1xf32> to vector<8x2048xf32>
    %108 = arith.subf %100, %107 : vector<8x2048xf32>
    %109 = arith.mulf %108, %108 : vector<8x2048xf32>
    %cst_66 = arith.constant dense<0.000000e+00> : vector<8xf32>
    %110 = vector.multi_reduction <add>, %109, %cst_66 [1] : vector<8x2048xf32> to vector<8xf32>
    %111 = vector.shape_cast %110 : vector<8xf32> to vector<8x1xf32>
    %cst_67 = arith.constant 4.8828125E-4 : f32
    %112 = vector.broadcast %cst_67 : f32 to vector<8x1xf32>
    %113 = arith.mulf %111, %112 : vector<8x1xf32>
    %cst_68 = arith.constant 9.99999974E-6 : f32
    %114 = vector.broadcast %cst_68 : f32 to vector<8x1xf32>
    %115 = arith.addf %113, %114 : vector<8x1xf32>
    %116 = math.rsqrt %115 : vector<8x1xf32>
    %117 = vector.broadcast %116 : vector<8x1xf32> to vector<8x2048xf32>
    %118 = arith.mulf %108, %117 : vector<8x2048xf32>
    %119 = vector.broadcast %101 : vector<8x1xf32> to vector<8x2048xf32>
    %120 = arith.mulf %118, %119 : vector<8x2048xf32>
    %121 = vector.broadcast %102 : vector<8x1xf32> to vector<8x2048xf32>
    %122 = arith.addf %120, %121 : vector<8x2048xf32>
    %cst_69 = arith.constant 0.000000e+00 : f32
    %123 = vector.broadcast %cst_69 : f32 to vector<8x2048xf32>
    %124 = arith.maximumf %122, %123 : vector<8x2048xf32>
    %c0_70 = arith.constant 0 : index
    %c0_71 = arith.constant 0 : index
    %125 = vector.load %arg15[%c0_70, %c0_71] : memref<8x2048xf32, #tpu.memory_space<vmem>>, vector<8x2048xf32>
    tpu.vector_store %arg15[%c0_70, %c0_71], %124 {strides = array<i32>} : memref<8x2048xf32, #tpu.memory_space<vmem>>, vector<8x2048xf32>,
    return
  }
}

</mosaic_0001>

<llo_original>
// kernel: decoder_block_forward.1
$region0: #{decoder_block_forward.1}
  #allocation0 [shape = 'u32[]', space=smem, size = 0x4, offset = 0x4, fixed_abs, tag = 'smem constant byte address 0x4 - core index']
  #allocation1 [shape = 'u32[144,128]{1,0:T(1,128)}', space=vmem, size = 0x12000, scoped, tag = 'internal scratch']
  #allocation2 [shape = 'f32[4,529]{1,0:T(4,128)}', space=vmem, size = 0x2800, scoped, tag = 'scratch operand']
  #allocation3 [shape = 'bf16[36,2048]{1,0:T(8,128)(2,1)}', space=vmem, size = 0x28000, scoped, tag = 'scratch operand']
  %s0 = inlined_call_operand.vmem [shape: bf16[16,512], index: 0, kind: input, shape index: {}]
  %s1 = inlined_call_operand.vmem [shape: bf16[4,16], index: 1, kind: input, shape index: {}]
  %s2 = inlined_call_operand.vmem [shape: f32[4,1], index: 2, kind: input, shape index: {}]
  %s3 = inlined_call_operand.vmem [shape: f32[4,1], index: 3, kind: input, shape index: {}]
  %s4 = inlined_call_operand.vmem [shape: f32[4,1], index: 4, kind: input, shape index: {}]
  %s5 = inlined_call_operand.vmem [shape: bf16[4,36], index: 5, kind: input, shape index: {}]
  %s6 = inlined_call_operand.vmem [shape: f32[4,1], index: 6, kind: input, shape index: {}]
  %s7 = inlined_call_operand.vmem [shape: f32[4,1], index: 7, kind: input, shape index: {}]
  %s8 = inlined_call_operand.vmem [shape: f32[4,1], index: 8, kind: input, shape index: {}]
  %s9 = inlined_call_operand.vmem [shape: bf16[8,4], index: 9, kind: input, shape index: {}]
  %s10 = inlined_call_operand.vmem [shape: f32[8,1], index: 10, kind: input, shape index: {}]
  %s11 = inlined_call_operand.vmem [shape: f32[8,1], index: 11, kind: input, shape index: {}]
  %s12 = inlined_call_operand.vmem [shape: f32[8,1], index: 12, kind: input, shape index: {}]
  %s13 = inlined_call_operand.vmem [shape: f32[1,512], index: 13, kind: input, shape index: {}]
  %s14 = inlined_call_operand.vmem [shape: f32[1,512], index: 14, kind: input, shape index: {}]
  %s15 = inlined_call_operand.vmem [shape: f32[8,2048], index: 15, kind: output, shape index: {}]
  %s16 = sld [smem:[#allocation0]]
  $region70: #{decoder_block_forward.1} parent=0
    _
  %s18 = ssub.s32 1, %s16
  %s19 = scalar_select 0, %s18, %s16
  // Predicated region
  $region2: #{decoder_block_forward.1} parent=0 // pred_check
    _
  $region3: #{decoder_block_forward.1} parent=0 // pred_check_branch
    %21 = sbr.rel (0) target = $region5
  $region4: #{decoder_block_forward.1} parent=0 // pred_region
    _
  $region5: #{decoder_block_forward.1} parent=0 // pred_fallthru
    _
  // Predicated region
  $region6: #{decoder_block_forward.1} parent=0 // pred_check
    _
  $region7: #{decoder_block_forward.1} parent=0 // pred_check_branch
    %23 = sbr.rel (0) target = $region9
  $region8: #{decoder_block_forward.1} parent=0 // pred_region
    _
  $region9: #{decoder_block_forward.1} parent=0 // pred_fallthru
    _
  // Predicated region
  $region10: #{decoder_block_forward.1} parent=0 // pred_check
    _
  $region11: #{decoder_block_forward.1} parent=0 // pred_check_branch
    %25 = sbr.rel (0) target = $region13
  $region12: #{decoder_block_forward.1} parent=0 // pred_region
    _
  $region13: #{decoder_block_forward.1} parent=0 // pred_fallthru
    _
  // Predicated region
  $region14: #{decoder_block_forward.1} parent=0 // pred_check
    _
  $region15: #{decoder_block_forward.1} parent=0 // pred_check_branch
    %27 = sbr.rel (0) target = $region17
  $region16: #{decoder_block_forward.1} parent=0 // pred_region
    _
  $region17: #{decoder_block_forward.1} parent=0 // pred_fallthru
    _
  // Predicated region
  $region18: #{decoder_block_forward.1} parent=0 // pred_check
    _
  $region19: #{decoder_block_forward.1} parent=0 // pred_check_branch
    %29 = sbr.rel (0) target = $region21
  $region20: #{decoder_block_forward.1} parent=0 // pred_region
    _
  $region21: #{decoder_block_forward.1} parent=0 // pred_fallthru
    _
  // Predicated region
  $region22: #{decoder_block_forward.1} parent=0 // pred_check
    _
  $region23: #{decoder_block_forward.1} parent=0 // pred_check_branch
    %31 = sbr.rel (0) target = $region25
  $region24: #{decoder_block_forward.1} parent=0 // pred_region
    _
  $region25: #{decoder_block_forward.1} parent=0 // pred_fallthru
    _
  // Predicated region
  $region26: #{decoder_block_forward.1} parent=0 // pred_check
    _
  $region27: #{decoder_block_forward.1} parent=0 // pred_check_branch
    %33 = sbr.rel (0) target = $region29
  $region28: #{decoder_block_forward.1} parent=0 // pred_region
    _
  $region29: #{decoder_block_forward.1} parent=0 // pred_fallthru
    _
  // Predicated region
  $region30: #{decoder_block_forward.1} parent=0 // pred_check
    _
  $region31: #{decoder_block_forward.1} parent=0 // pred_check_branch
    %35 = sbr.rel (0) target = $region33
  $region32: #{decoder_block_forward.1} parent=0 // pred_region
    _
  $region33: #{decoder_block_forward.1} parent=0 // pred_fallthru
    _
  // Predicated region
  $region34: #{decoder_block_forward.1} parent=0 // pred_check
    _
  $region35: #{decoder_block_forward.1} parent=0 // pred_check_branch
    %37 = sbr.rel (0) target = $region37
  $region36: #{decoder_block_forward.1} parent=0 // pred_region
    _
  $region37: #{decoder_block_forward.1} parent=0 // pred_fallthru
    _
  // Predicated region
  $region38: #{decoder_block_forward.1} parent=0 // pred_check
    _
  $region39: #{decoder_block_forward.1} parent=0 // pred_check_branch
    %39 = sbr.rel (0) target = $region41
  $region40: #{decoder_block_forward.1} parent=0 // pred_region
    _
  $region41: #{decoder_block_forward.1} parent=0 // pred_fallthru
    _
  // Predicated region
  $region42: #{decoder_block_forward.1} parent=0 // pred_check
    _
  $region43: #{decoder_block_forward.1} parent=0 // pred_check_branch
    %41 = sbr.rel (0) target = $region45
  $region44: #{decoder_block_forward.1} parent=0 // pred_region
    _
  $region45: #{decoder_block_forward.1} parent=0 // pred_fallthru
    _
  // Predicated region
  $region46: #{decoder_block_forward.1} parent=0 // pred_check
    _
  $region47: #{decoder_block_forward.1} parent=0 // pred_check_branch
    %43 = sbr.rel (0) target = $region49
  $region48: #{decoder_block_forward.1} parent=0 // pred_region
    _
  $region49: #{decoder_block_forward.1} parent=0 // pred_fallthru
    _
  // Predicated region
  $region50: #{decoder_block_forward.1} parent=0 // pred_check
    _
  $region51: #{decoder_block_forward.1} parent=0 // pred_check_branch
    %45 = sbr.rel (0) target = $region53
  $region52: #{decoder_block_forward.1} parent=0 // pred_region
    _
  $region53: #{decoder_block_forward.1} parent=0 // pred_fallthru
    _
  // Predicated region
  $region54: #{decoder_block_forward.1} parent=0 // pred_check
    _
  $region55: #{decoder_block_forward.1} parent=0 // pred_check_branch
    %47 = sbr.rel (0) target = $region57
  $region56: #{decoder_block_forward.1} parent=0 // pred_region
    _
  $region57: #{decoder_block_forward.1} parent=0 // pred_fallthru
    _
  // Predicated region
  $region58: #{decoder_block_forward.1} parent=0 // pred_check
    _
  $region59: #{decoder_block_forward.1} parent=0 // pred_check_branch
    %49 = sbr.rel (0) target = $region61
  $region60: #{decoder_block_forward.1} parent=0 // pred_region
    _
  $region61: #{decoder_block_forward.1} parent=0 // pred_fallthru
    _
  %v51 = vld [vmem:[%s1] sm:$0x3]
  %v52 = vld [vmem:[%s0] sm:$0xff]
  %v53 = vld [vmem:[%s0 + $0x8] sm:$0xff]
  %v54 = vld [vmem:[%s0 + $0x10] sm:$0xff]
  %v55 = vld [vmem:[%s0 + $0x18] sm:$0xff]
  %v56 = vld [vmem:[%s2] sm:$0xf]
  %58 = vset.pattern.permute.xlu0 0
  %59 = vperm.xlu0 %58, %v56
  %v60 = vpop.permute.xlu0 %59
  %v66 = vunpack.c.l.b16 %v52
  %v67 = vunpack.c.h.b16 %v52
  %v68 = vunpack.c.l.b16 %v53
  %v69 = vunpack.c.h.b16 %v53
  %v70 = vunpack.c.l.b16 %v54
  %v71 = vunpack.c.h.b16 %v54
  %v72 = vunpack.c.l.b16 %v55
  %v73 = vunpack.c.h.b16 %v55
  %v74 = vpack.c.b16 %v70, %v66
  %v75 = vpack.c.b16 %v71, %v67
  %v76 = vpack.c.b16 %v72, %v68
  %v77 = vpack.c.b16 %v73, %v69
  %vm82 = vcmask 130048
  %v84 = vsel %vm82, %v51, 0
  %86 = vmatprep.subr.bf16.mxu0 %v75
  %87 = vmatpush1.bf16.msra.mxu0 %v74
  %88 = vmatprep.subr.bf16.mxu0 0
  %89 = vmatpush1.bf16.msra.mxu0 0
  %90 = vmatprep.subr.bf16.mxu0 0
  %91 = vmatpush1.bf16.msra.mxu0 0
  %92 = vmatprep.subr.bf16.mxu0 0
  %93 = vmatpush1.bf16.msra.mxu0 0
  %94 = vmatprep.subr.bf16.mxu0 0
  %95 = vmatpush1.bf16.msra.mxu0 0
  %96 = vmatprep.subr.bf16.mxu0 0
  %97 = vmatpush1.bf16.msra.mxu0 0
  %98 = vmatprep.subr.bf16.mxu0 0
  %99 = vmatpush1.bf16.msra.mxu0 0
  %100 = vmatprep.subr.bf16.mxu0 0
  %101 = vmatpush1.bf16.msra.mxu0 0
  %102 = vmatprep.subr.bf16.mxu0 0
  %103 = vmatpush1.bf16.msra.mxu0 0
  %104 = vmatprep.subr.bf16.mxu0 0
  %105 = vmatpush1.bf16.msra.mxu0 0
  %106 = vmatprep.subr.bf16.mxu0 0
  %107 = vmatpush1.bf16.msra.mxu0 0
  %108 = vmatprep.subr.bf16.mxu0 0
  %109 = vmatpush1.bf16.msra.mxu0 0
  %110 = vmatprep.subr.bf16.mxu0 0
  %111 = vmatpush1.bf16.msra.mxu0 0
  %112 = vmatprep.subr.bf16.mxu0 0
  %113 = vmatpush1.bf16.msra.mxu0 0
  %114 = vmatprep.subr.bf16.mxu0 0
  %115 = vmatpush1.bf16.msra.mxu0 0
  %116 = vmatprep.subr.bf16.mxu0 0
  %117 = vmatpush1.bf16.msra.mxu0 0
  %118 = vmatprep.mubr.bf16.mxu0 0
  %119 = vmatmul.mubr.bf16.gmra.mrb[0].mxu0 %v84
  %v120 = vpop.f32.mrb[0].mxu0
  %v121 = vadd.f32 %v60, %v120
  %v122 = vpop.f32.mrb[0].mxu0
  %v123 = vadd.f32 %v60, %v122
  %v124 = vpop.f32.mrb[0].mxu0
  %v125 = vpop.f32.mrb[0].mxu0
  %126 = vdwg.mxu0
  %127 = vmatprep.subr.bf16.mxu0 %v77
  %128 = vmatpush1.bf16.msra.mxu0 %v76
  %129 = vmatprep.subr.bf16.mxu0 0
  %130 = vmatpush1.bf16.msra.mxu0 0
  %131 = vmatprep.subr.bf16.mxu0 0
  %132 = vmatpush1.bf16.msra.mxu0 0
  %133 = vmatprep.subr.bf16.mxu0 0
  %134 = vmatpush1.bf16.msra.mxu0 0
  %135 = vmatprep.subr.bf16.mxu0 0
  %136 = vmatpush1.bf16.msra.mxu0 0
  %137 = vmatprep.subr.bf16.mxu0 0
  %138 = vmatpush1.bf16.msra.mxu0 0
  %139 = vmatprep.subr.bf16.mxu0 0
  %140 = vmatpush1.bf16.msra.mxu0 0
  %141 = vmatprep.subr.bf16.mxu0 0
  %142 = vmatpush1.bf16.msra.mxu0 0
  %143 = vmatprep.subr.bf16.mxu0 0
  %144 = vmatpush1.bf16.msra.mxu0 0
  %145 = vmatprep.subr.bf16.mxu0 0
  %146 = vmatpush1.bf16.msra.mxu0 0
  %147 = vmatprep.subr.bf16.mxu0 0
  %148 = vmatpush1.bf16.msra.mxu0 0
  %149 = vmatprep.subr.bf16.mxu0 0
  %150 = vmatpush1.bf16.msra.mxu0 0
  %151 = vmatprep.subr.bf16.mxu0 0
  %152 = vmatpush1.bf16.msra.mxu0 0
  %153 = vmatprep.subr.bf16.mxu0 0
  %154 = vmatpush1.bf16.msra.mxu0 0
  %155 = vmatprep.subr.bf16.mxu0 0
  %156 = vmatpush1.bf16.msra.mxu0 0
  %157 = vmatprep.subr.bf16.mxu0 0
  %158 = vmatpush1.bf16.msra.mxu0 0
  %159 = vmatprep.mubr.bf16.mxu0 0
  %160 = vmatmul.mubr.bf16.gmra.mrb[0].mxu0 %v84
  %v161 = vpop.f32.mrb[0].mxu0
  %v162 = vadd.f32 %v60, %v161
  %v163 = vpop.f32.mrb[0].mxu0
  %v164 = vadd.f32 %v60, %v163
  %v165 = vpop.f32.mrb[0].mxu0
  %v166 = vpop.f32.mrb[0].mxu0
  %167 = vdwg.mxu0
  %v168 = vld [vmem:[%s3] sm:$0xf]
  %v169 = vld [vmem:[%s4] sm:$0xf]
  %vm170 = vcmask 1043456
  %v171 = vsel %vm170, %v121, 0.0
  %v172 = vsel %vm170, %v123, 0.0
  %v173 = vadd.f32 %v171, %v172
  %v174 = vsel %vm170, %v162, 0.0
  %v175 = vadd.f32 %v173, %v174
  %v176 = vsel %vm170, %v164, 0.0
  %v177 = vadd.f32 %v175, %v176
  %178 = vadd.xlane.f32.xlu0 %v177
  %v179 = vpop.xlane.xlu0 %178
  %v180 = vmul.f32 %v179, 0.001953125
  %v181 = vsub.f32 %v121, %v180
  %v182 = vsub.f32 %v123, %v180
  %v183 = vsub.f32 %v162, %v180
  %v184 = vsub.f32 %v164, %v180
  %v185 = vmul.f32 %v181, %v181
  %v186 = vmul.f32 %v182, %v182
  %v187 = vmul.f32 %v183, %v183
  %v188 = vmul.f32 %v184, %v184
  %v189 = vsel %vm170, %v185, 0.0
  %v190 = vsel %vm170, %v186, 0.0
  %v191 = vadd.f32 %v189, %v190
  %v192 = vsel %vm170, %v187, 0.0
  %v193 = vadd.f32 %v191, %v192
  %v194 = vsel %vm170, %v188, 0.0
  %v195 = vadd.f32 %v193, %v194
  %196 = vadd.xlane.f32.xlu0 %v195
  %v197 = vpop.xlane.xlu0 %196
  %v198 = vmul.f32 %v197, 0.001953125
  %v199 = vadd.f32 %v198, 1e-05
  %v200 = vrsqrt.pop %v199
  %v201 = vmul.f32 %v181, %v200
  %v202 = vmul.f32 %v182, %v200
  %v203 = vmul.f32 %v183, %v200
  %v204 = vmul.f32 %v184, %v200
  %206 = vset.pattern.permute.xlu0 0
  %207 = vperm.xlu0 %206, %v168
  %v208 = vpop.permute.xlu0 %207
  %v210 = vmul.f32 %v201, %v208
  %v211 = vmul.f32 %v202, %v208
  %v212 = vmul.f32 %v203, %v208
  %v213 = vmul.f32 %v204, %v208
  %215 = vset.pattern.permute.xlu0 0
  %216 = vperm.xlu0 %215, %v169
  %v217 = vpop.permute.xlu0 %216
  %v219 = vadd.f32 %v210, %v217
  %v220 = vadd.f32 %v211, %v217
  %v221 = vadd.f32 %v212, %v217
  %v222 = vadd.f32 %v213, %v217
  %v223 = vmax.f32 %v219, 0.0
  %v224 = vmax.f32 %v220, 0.0
  %v225 = vmax.f32 %v221, 0.0
  %v226 = vmax.f32 %v222, 0.0
  %227 = vst [vmem:[#allocation2] sm:$0xff] 0.0
  %228 = vst [vmem:[#allocation2 + $0x8] sm:$0xff] 0.0
  %vm229 = vcmask 134144
  %230 = vst.msk [vmem:[#allocation2 + $0x10] sm:$0xf] %vm229, 0.0
  %v235 = vcombine.low %v223, %v224
  %v236 = vcombine.low %v225, %v226
  %239 = vst [vmem:[#allocation2] sm:$0xff] %v235
  %240 = vst [vmem:[#allocation2 + $0x8] sm:$0xff] %v236
  %v241 = vld [vmem:[%s13] sm:$0xf]
  %v242 = vld [vmem:[%s14] sm:$0xf]
  %v243 = vld [vmem:[#allocation2] sm:$0xff]
  %v244 = vld [vmem:[#allocation2 + $0x8] sm:$0xff]
  %v245 = vld [vmem:[#allocation2 + $0x10] sm:$0xf]
  %v247 = vlaneseq
  %v248 = vshrl.u32 %v247, 7
  %v249 = vsub.s32 0, %v248
  %v250 = vrot.slane %v241, %v249
  %v251 = vlaneseq
  %v252 = vshrl.u32 %v251, 7
  %v253 = vsub.s32 1, %v252
  %v254 = vrot.slane %v241, %v253
  %v255 = vlaneseq
  %v256 = vshrl.u32 %v255, 7
  %v257 = vsub.s32 2, %v256
  %v258 = vrot.slane %v241, %v257
  %v259 = vlaneseq
  %v260 = vshrl.u32 %v259, 7
  %v261 = vsub.s32 3, %v260
  %v262 = vrot.slane %v241, %v261
  %v263 = vcombine.low %v250, %v254
  %v264 = vcombine.low %v258, %v262
  %265 = vrot.lane.b32.xlu0 %v263, 1
  %v266 = vpop.permute.xlu0 %265
  %267 = vrot.lane.b32.xlu0 %v264, 1
  %v268 = vpop.permute.xlu0 %267
  %v269 = vrot.slane %v266, 4
  %v270 = vrot.slane %v268, 4
  %vm271 = vcmask 7168
  %v272 = vsel %vm271, %v269, %v266
  %v273 = vsel %vm170, %v269, %v270
  %v274 = vsel %vm271, %v273, %v268
  %v278 = vmul.f32 %v243, %v272
  %v279 = vmul.f32 %v244, %v274
  %v280 = vmul.f32 %v245, %v270
  %v282 = vlaneseq
  %v283 = vshrl.u32 %v282, 7
  %v284 = vsub.s32 0, %v283
  %v285 = vrot.slane %v242, %v284
  %v286 = vlaneseq
  %v287 = vshrl.u32 %v286, 7
  %v288 = vsub.s32 1, %v287
  %v289 = vrot.slane %v242, %v288
  %v290 = vlaneseq
  %v291 = vshrl.u32 %v290, 7
  %v292 = vsub.s32 2, %v291
  %v293 = vrot.slane %v242, %v292
  %v294 = vlaneseq
  %v295 = vshrl.u32 %v294, 7
  %v296 = vsub.s32 3, %v295
  %v297 = vrot.slane %v242, %v296
  %v298 = vcombine.low %v285, %v289
  %v299 = vcombine.low %v293, %v297
  %300 = vrot.lane.b32.xlu0 %v298, 16
  %v301 = vpop.permute.xlu0 %300
  %302 = vrot.lane.b32.xlu0 %v299, 16
  %v303 = vpop.permute.xlu0 %302
  %v304 = vrot.slane %v301, 4
  %v305 = vrot.slane %v303, 4
  %v306 = vsel %vm82, %v304, %v301
  %v307 = vsel %vm170, %v304, %v305
  %v308 = vsel %vm82, %v307, %v303
  %v312 = vmul.f32 %v243, %v306
  %v313 = vmul.f32 %v244, %v308
  %v314 = vmul.f32 %v245, %v305
  %v315 = vmul.f32 %v241, %v242
  %v317 = vlaneseq
  %v318 = vshrl.u32 %v317, 7
  %v319 = vsub.s32 0, %v318
  %v320 = vrot.slane %v315, %v319
  %v321 = vlaneseq
  %v322 = vshrl.u32 %v321, 7
  %v323 = vsub.s32 1, %v322
  %v324 = vrot.slane %v315, %v323
  %v325 = vlaneseq
  %v326 = vshrl.u32 %v325, 7
  %v327 = vsub.s32 2, %v326
  %v328 = vrot.slane %v315, %v327
  %v329 = vlaneseq
  %v330 = vshrl.u32 %v329, 7
  %v331 = vsub.s32 3, %v330
  %v332 = vrot.slane %v315, %v331
  %v333 = vcombine.low %v320, %v324
  %v334 = vcombine.low %v328, %v332
  %335 = vrot.lane.b32.xlu0 %v333, 17
  %v336 = vpop.permute.xlu0 %335
  %337 = vrot.lane.b32.xlu0 %v334, 17
  %v338 = vpop.permute.xlu0 %337
  %v339 = vrot.slane %v336, 4
  %v340 = vrot.slane %v338, 4
  %vm341 = vcmask 138240
  %v342 = vsel %vm341, %v339, %v336
  %v343 = vsel %vm170, %v339, %v340
  %v344 = vsel %vm341, %v343, %v338
  %v348 = vmul.f32 %v243, %v342
  %v349 = vmul.f32 %v244, %v344
  %v350 = vmul.f32 %v245, %v340
  %351 = vst [vmem:[#allocation3] sm:$0xff] 0
  %352 = vst [vmem:[#allocation3 + $0x8] sm:$0xff] 0
  %353 = vst [vmem:[#allocation3 + $0x10] sm:$0xff] 0
  %354 = vst [vmem:[#allocation3 + $0x18] sm:$0xff] 0
  %355 = vst [vmem:[#allocation3 + $0x20] sm:$0xff] 0
  %356 = vst [vmem:[#allocation3 + $0x28] sm:$0xff] 0
  %357 = vst [vmem:[#allocation3 + $0x30] sm:$0xff] 0
  %358 = vst [vmem:[#allocation3 + $0x38] sm:$0xff] 0
  %359 = vst [vmem:[#allocation3 + $0x40] sm:$0xff] 0
  %360 = vst [vmem:[#allocation3 + $0x48] sm:$0xff] 0
  %361 = vst [vmem:[#allocation3 + $0x50] sm:$0xff] 0
  %362 = vst [vmem:[#allocation3 + $0x58] sm:$0xff] 0
  %363 = vst [vmem:[#allocation3 + $0x60] sm:$0xff] 0
  %364 = vst [vmem:[#allocation3 + $0x68] sm:$0xff] 0
  %365 = vst [vmem:[#allocation3 + $0x70] sm:$0xff] 0
  %366 = vst [vmem:[#allocation3 + $0x78] sm:$0xff] 0
  %367 = vst [vmem:[#allocation3 + $0x80] sm:$0xff] 0
  %368 = vst [vmem:[#allocation3 + $0x88] sm:$0xff] 0
  %369 = vst [vmem:[#allocation3 + $0x90] sm:$0xff] 0
  %370 = vst [vmem:[#allocation3 + $0x98] sm:$0xff] 0
  %371 = vst [vmem:[#allocation3 + $0xa0] sm:$0xff] 0
  %372 = vst [vmem:[#allocation3 + $0xa8] sm:$0xff] 0
  %373 = vst [vmem:[#allocation3 + $0xb0] sm:$0xff] 0
  %374 = vst [vmem:[#allocation3 + $0xb8] sm:$0xff] 0
  %375 = vst [vmem:[#allocation3 + $0xc0] sm:$0xff] 0
  %376 = vst [vmem:[#allocation3 + $0xc8] sm:$0xff] 0
  %377 = vst [vmem:[#allocation3 + $0xd0] sm:$0xff] 0
  %378 = vst [vmem:[#allocation3 + $0xd8] sm:$0xff] 0
  %379 = vst [vmem:[#allocation3 + $0xe0] sm:$0xff] 0
  %380 = vst [vmem:[#allocation3 + $0xe8] sm:$0xff] 0
  %381 = vst [vmem:[#allocation3 + $0xf0] sm:$0xff] 0
  %382 = vst [vmem:[#allocation3 + $0xf8] sm:$0xff] 0
  %383 = vst [vmem:[#allocation3 + $0x100] sm:$0x33] 0
  %384 = vst [vmem:[#allocation3 + $0x108] sm:$0x33] 0
  %385 = vst [vmem:[#allocation3 + $0x110] sm:$0x33] 0
  %386 = vst [vmem:[#allocation3 + $0x118] sm:$0x33] 0
  %387 = vst [vmem:[#allocation3 + $0x120] sm:$0x33] 0
  %388 = vst [vmem:[#allocation3 + $0x128] sm:$0x33] 0
  %389 = vst [vmem:[#allocation3 + $0x130] sm:$0x33] 0
  %390 = vst [vmem:[#allocation3 + $0x138] sm:$0x33] 0
  %v391 = vpack.c.bf16 %v223, %v223
  %v392 = vpack.c.bf16 %v224, %v224
  %v393 = vpack.c.bf16 %v225, %v225
  %v394 = vpack.c.bf16 %v226, %v226
  %v399 = vunpack.c.l.b16 %v391
  %v400 = vunpack.c.l.b16 %v392
  %v401 = vunpack.c.l.b16 %v393
  %v402 = vunpack.c.l.b16 %v394
  %v403 = vpack.c.b16 %v400, %v399
  %v404 = vpack.c.b16 %v402, %v401
  %407 = vst [vmem:[#allocation3 + $0x80] sm:$0x33] %v403
  %408 = vst [vmem:[#allocation3 + $0x88] sm:$0x33] %v404
  %v409 = vrot.slane %v403, 6
  %v410 = vrot.slane %v404, 6
  %413 = vst [vmem:[#allocation3 + $0x90] sm:$0xcc] %v409
  %414 = vst [vmem:[#allocation3 + $0x98] sm:$0xcc] %v410
  %v417 = vcombine.high %v278, %v278
  %v418 = vcombine.high %v279, %v279
  %v421 = vpack.c.bf16 %v278, %v278
  %v422 = vpack.c.bf16 %v417, %v417
  %v423 = vpack.c.bf16 %v279, %v279
  %v424 = vpack.c.bf16 %v418, %v418
  %v425 = vpack.c.bf16 %v280, %v280
  %v431 = vunpack.c.l.b16 %v421
  %v432 = vunpack.c.l.b16 %v422
  %v433 = vunpack.c.l.b16 %v423
  %v434 = vunpack.c.l.b16 %v424
  %v435 = vunpack.c.l.b16 %v425
  %v436 = vpack.c.b16 %v432, %v431
  %v437 = vpack.c.b16 %v434, %v433
  %v438 = vpack.c.b16 %v435, %v435
  %v439 = vrot.slane %v436, 6
  %v440 = vrot.slane %v437, 6
  %v441 = vrot.slane %v438, 6
  %442 = vrot.lane.b32.xlu0 %v439, 127
  %v443 = vpop.permute.xlu0 %442
  %444 = vrot.lane.b32.xlu0 %v440, 127
  %v445 = vpop.permute.xlu0 %444
  %446 = vrot.lane.b32.xlu0 %v441, 127
  %v447 = vpop.permute.xlu0 %446
  %v448 = vrot.slane %v443, 4
  %v449 = vrot.slane %v445, 4
  %v450 = vrot.slane %v447, 4
  %vm451 = vcmask 1043456
  %v452 = vsel %vm451, %v448, %v449
  %vm453 = vcmask 1039360
  %v454 = vsel %vm453, %v443, %v452
  %v455 = vsel %vm451, %v449, %v450
  %v456 = vsel %vm453, %v445, %v455
  %459 = vst [vmem:[#allocation3 + $0x50] sm:$0xcc] %v454
  %460 = vst [vmem:[#allocation3 + $0x58] sm:$0xcc] %v456
  %461 = vst [vmem:[#allocation3 + $0xe0] sm:$0xcc] %v409
  %462 = vst [vmem:[#allocation3 + $0xe8] sm:$0xcc] %v410
  %v465 = vcombine.high %v312, %v312
  %v466 = vcombine.high %v313, %v313
  %v469 = vpack.c.bf16 %v312, %v312
  %v470 = vpack.c.bf16 %v465, %v465
  %v471 = vpack.c.bf16 %v313, %v313
  %v472 = vpack.c.bf16 %v466, %v466
  %v473 = vpack.c.bf16 %v314, %v314
  %v479 = vunpack.c.l.b16 %v469
  %v480 = vunpack.c.l.b16 %v470
  %v481 = vunpack.c.l.b16 %v471
  %v482 = vunpack.c.l.b16 %v472
  %v483 = vunpack.c.l.b16 %v473
  %v484 = vpack.c.b16 %v480, %v479
  %v485 = vpack.c.b16 %v482, %v481
  %v486 = vpack.c.b16 %v483, %v483
  %v487 = vrot.slane %v484, 6
  %v488 = vrot.slane %v485, 6
  %v489 = vrot.slane %v486, 6
  %490 = vrot.lane.b32.xlu0 %v487, 112
  %v491 = vpop.permute.xlu0 %490
  %492 = vrot.lane.b32.xlu0 %v488, 112
  %v493 = vpop.permute.xlu0 %492
  %494 = vrot.lane.b32.xlu0 %v489, 112
  %v495 = vpop.permute.xlu0 %494
  %v496 = vrot.slane %v491, 4
  %v497 = vrot.slane %v493, 4
  %v498 = vrot.slane %v495, 4
  %v499 = vsel %vm451, %v496, %v497
  %vm500 = vcmask 916480
  %v501 = vsel %vm500, %v491, %v499
  %v502 = vsel %vm451, %v497, %v498
  %v503 = vsel %vm500, %v493, %v502
  %506 = vst [vmem:[#allocation3 + $0x20] sm:$0xcc] %v501
  %507 = vst [vmem:[#allocation3 + $0x28] sm:$0xcc] %v503
  %508 = vst [vmem:[#allocation3 + $0x130] sm:$0x33] %v403
  %509 = vst [vmem:[#allocation3 + $0x138] sm:$0x33] %v404
  %510 = vrot.lane.b32.xlu0 %v436, 127
  %v511 = vpop.permute.xlu0 %510
  %512 = vrot.lane.b32.xlu0 %v437, 127
  %v513 = vpop.permute.xlu0 %512
  %514 = vrot.lane.b32.xlu0 %v438, 127
  %v515 = vpop.permute.xlu0 %514
  %v516 = vrot.slane %v511, 4
  %v517 = vrot.slane %v513, 4
  %v518 = vrot.slane %v515, 4
  %v519 = vsel %vm451, %v516, %v517
  %v520 = vsel %vm453, %v511, %v519
  %v521 = vsel %vm451, %v517, %v518
  %v522 = vsel %vm453, %v513, %v521
  %525 = vst [vmem:[#allocation3 + $0xf0] sm:$0x33] %v520
  %526 = vst [vmem:[#allocation3 + $0xf8] sm:$0x33] %v522
  %527 = vrot.lane.b32.xlu0 %v484, 112
  %v528 = vpop.permute.xlu0 %527
  %529 = vrot.lane.b32.xlu0 %v485, 112
  %v530 = vpop.permute.xlu0 %529
  %531 = vrot.lane.b32.xlu0 %v486, 112
  %v532 = vpop.permute.xlu0 %531
  %v533 = vrot.slane %v528, 4
  %v534 = vrot.slane %v530, 4
  %v535 = vrot.slane %v532, 4
  %v536 = vsel %vm451, %v533, %v534
  %v537 = vsel %vm500, %v528, %v536
  %v538 = vsel %vm451, %v534, %v535
  %v539 = vsel %vm500, %v530, %v538
  %542 = vst [vmem:[#allocation3 + $0x70] sm:$0x33] %v537
  %543 = vst [vmem:[#allocation3 + $0x78] sm:$0x33] %v539
  %v546 = vcombine.high %v348, %v348
  %v547 = vcombine.high %v349, %v349
  %v550 = vpack.c.bf16 %v348, %v348
  %v551 = vpack.c.bf16 %v546, %v546
  %v552 = vpack.c.bf16 %v349, %v349
  %v553 = vpack.c.bf16 %v547, %v547
  %v554 = vpack.c.bf16 %v350, %v350
  %v560 = vunpack.c.l.b16 %v550
  %v561 = vunpack.c.l.b16 %v551
  %v562 = vunpack.c.l.b16 %v552
  %v563 = vunpack.c.l.b16 %v553
  %v564 = vunpack.c.l.b16 %v554
  %v565 = vpack.c.b16 %v561, %v560
  %v566 = vpack.c.b16 %v563, %v562
  %v567 = vpack.c.b16 %v564, %v564
  %568 = vrot.lane.b32.xlu0 %v565, 111
  %v569 = vpop.permute.xlu0 %568
  %570 = vrot.lane.b32.xlu0 %v566, 111
  %v571 = vpop.permute.xlu0 %570
  %572 = vrot.lane.b32.xlu0 %v567, 111
  %v573 = vpop.permute.xlu0 %572
  %v574 = vrot.slane %v569, 4
  %v575 = vrot.slane %v571, 4
  %v576 = vrot.slane %v573, 4
  %v577 = vsel %vm451, %v574, %v575
  %vm578 = vcmask 908288
  %v579 = vsel %vm578, %v569, %v577
  %v580 = vsel %vm451, %v575, %v576
  %v581 = vsel %vm578, %v571, %v580
  %584 = vst [vmem:[#allocation3 + $0x30] sm:$0x33] %v579
  %585 = vst [vmem:[#allocation3 + $0x38] sm:$0x33] %v581
  %v586 = vld [vmem:[%s5] sm:$0x3]
  %v587 = vld [vmem:[#allocation3] sm:$0xff]
  %v588 = vld [vmem:[#allocation3 + $0x8] sm:$0xff]
  %v589 = vld [vmem:[#allocation3 + $0x10] sm:$0xff]
  %v590 = vld [vmem:[#allocation3 + $0x18] sm:$0xff]
  %v591 = vld [vmem:[#allocation3 + $0x20] sm:$0xff]
  %v592 = vld [vmem:[#allocation3 + $0x28] sm:$0xff]
  %v593 = vld [vmem:[#allocation3 + $0x30] sm:$0xff]
  %v594 = vld [vmem:[#allocation3 + $0x38] sm:$0xff]
  %v595 = vld [vmem:[#allocation3 + $0x40] sm:$0xff]
  %v596 = vld [vmem:[#allocation3 + $0x48] sm:$0xff]
  %v597 = vld [vmem:[#allocation3 + $0x50] sm:$0xff]
  %v598 = vld [vmem:[#allocation3 + $0x58] sm:$0xff]
  %v599 = vld [vmem:[#allocation3 + $0x60] sm:$0xff]
  %v600 = vld [vmem:[#allocation3 + $0x68] sm:$0xff]
  %v601 = vld [vmem:[#allocation3 + $0x70] sm:$0xff]
  %v602 = vld [vmem:[#allocation3 + $0x78] sm:$0xff]
  %v603 = vld [vmem:[#allocation3 + $0x80] sm:$0xff]
  %v604 = vld [vmem:[#allocation3 + $0x88] sm:$0xff]
  %v605 = vld [vmem:[#allocation3 + $0x90] sm:$0xff]
  %v606 = vld [vmem:[#allocation3 + $0x98] sm:$0xff]
  %v607 = vld [vmem:[#allocation3 + $0xa0] sm:$0xff]
  %v608 = vld [vmem:[#allocation3 + $0xa8] sm:$0xff]
  %v609 = vld [vmem:[#allocation3 + $0xb0] sm:$0xff]
  %v610 = vld [vmem:[#allocation3 + $0xb8] sm:$0xff]
  %v611 = vld [vmem:[#allocation3 + $0xc0] sm:$0xff]
  %v612 = vld [vmem:[#allocation3 + $0xc8] sm:$0xff]
  %v613 = vld [vmem:[#allocation3 + $0xd0] sm:$0xff]
  %v614 = vld [vmem:[#allocation3 + $0xd8] sm:$0xff]
  %v615 = vld [vmem:[#allocation3 + $0xe0] sm:$0xff]
  %v616 = vld [vmem:[#allocation3 + $0xe8] sm:$0xff]
  %v617 = vld [vmem:[#allocation3 + $0xf0] sm:$0xff]
  %v618 = vld [vmem:[#allocation3 + $0xf8] sm:$0xff]
  %v619 = vld [vmem:[#allocation3 + $0x100] sm:$0x33]
  %v620 = vld [vmem:[#allocation3 + $0x108] sm:$0x33]
  %v621 = vld [vmem:[#allocation3 + $0x110] sm:$0x33]
  %v622 = vld [vmem:[#allocation3 + $0x118] sm:$0x33]
  %v623 = vld [vmem:[#allocation3 + $0x120] sm:$0x33]
  %v624 = vld [vmem:[#allocation3 + $0x128] sm:$0x33]
  %v625 = vld [vmem:[#allocation3 + $0x130] sm:$0x33]
  %v626 = vld [vmem:[#allocation3 + $0x138] sm:$0x33]
  %v627 = vld [vmem:[%s6] sm:$0xf]
  %629 = vset.pattern.permute.xlu0 0
  %630 = vperm.xlu0 %629, %v627
  %v631 = vpop.permute.xlu0 %630
  %v673 = vunpack.c.l.b16 %v587
  %v674 = vunpack.c.h.b16 %v587
  %v675 = vunpack.c.l.b16 %v588
  %v676 = vunpack.c.h.b16 %v588
  %v677 = vunpack.c.l.b16 %v589
  %v678 = vunpack.c.h.b16 %v589
  %v679 = vunpack.c.l.b16 %v590
  %v680 = vunpack.c.h.b16 %v590
  %v681 = vunpack.c.l.b16 %v591
  %v682 = vunpack.c.h.b16 %v591
  %v683 = vunpack.c.l.b16 %v592
  %v684 = vunpack.c.h.b16 %v592
  %v685 = vunpack.c.l.b16 %v593
  %v686 = vunpack.c.h.b16 %v593
  %v687 = vunpack.c.l.b16 %v594
  %v688 = vunpack.c.h.b16 %v594
  %v689 = vunpack.c.l.b16 %v595
  %v690 = vunpack.c.h.b16 %v595
  %v691 = vunpack.c.l.b16 %v596
  %v692 = vunpack.c.h.b16 %v596
  %v693 = vunpack.c.l.b16 %v597
  %v694 = vunpack.c.h.b16 %v597
  %v695 = vunpack.c.l.b16 %v598
  %v696 = vunpack.c.h.b16 %v598
  %v697 = vunpack.c.l.b16 %v599
  %v698 = vunpack.c.h.b16 %v599
  %v699 = vunpack.c.l.b16 %v600
  %v700 = vunpack.c.h.b16 %v600
  %v701 = vunpack.c.l.b16 %v601
  %v702 = vunpack.c.h.b16 %v601
  %v703 = vunpack.c.l.b16 %v602
  %v704 = vunpack.c.h.b16 %v602
  %v705 = vunpack.c.l.b16 %v603
  %v706 = vunpack.c.h.b16 %v603
  %v707 = vunpack.c.l.b16 %v604
  %v708 = vunpack.c.h.b16 %v604
  %v709 = vunpack.c.l.b16 %v605
  %v710 = vunpack.c.h.b16 %v605
  %v711 = vunpack.c.l.b16 %v606
  %v712 = vunpack.c.h.b16 %v606
  %v713 = vunpack.c.l.b16 %v607
  %v714 = vunpack.c.h.b16 %v607
  %v715 = vunpack.c.l.b16 %v608
  %v716 = vunpack.c.h.b16 %v608
  %v717 = vunpack.c.l.b16 %v609
  %v718 = vunpack.c.h.b16 %v609
  %v719 = vunpack.c.l.b16 %v610
  %v720 = vunpack.c.h.b16 %v610
  %v721 = vunpack.c.l.b16 %v611
  %v722 = vunpack.c.h.b16 %v611
  %v723 = vunpack.c.l.b16 %v612
  %v724 = vunpack.c.h.b16 %v612
  %v725 = vunpack.c.l.b16 %v613
  %v726 = vunpack.c.h.b16 %v613
  %v727 = vunpack.c.l.b16 %v614
  %v728 = vunpack.c.h.b16 %v614
  %v729 = vunpack.c.l.b16 %v615
  %v730 = vunpack.c.h.b16 %v615
  %v731 = vunpack.c.l.b16 %v616
  %v732 = vunpack.c.h.b16 %v616
  %v733 = vunpack.c.l.b16 %v617
  %v734 = vunpack.c.h.b16 %v617
  %v735 = vunpack.c.l.b16 %v618
  %v736 = vunpack.c.h.b16 %v618
  %v737 = vunpack.c.l.b16 %v619
  %v738 = vunpack.c.h.b16 %v619
  %v739 = vunpack.c.l.b16 %v620
  %v740 = vunpack.c.h.b16 %v620
  %v741 = vunpack.c.l.b16 %v621
  %v742 = vunpack.c.h.b16 %v621
  %v743 = vunpack.c.l.b16 %v622
  %v744 = vunpack.c.h.b16 %v622
  %v745 = vunpack.c.l.b16 %v623
  %v746 = vunpack.c.h.b16 %v623
  %v747 = vunpack.c.l.b16 %v624
  %v748 = vunpack.c.h.b16 %v624
  %v749 = vunpack.c.l.b16 %v625
  %v750 = vunpack.c.h.b16 %v625
  %v751 = vunpack.c.l.b16 %v626
  %v752 = vunpack.c.h.b16 %v626
  %v753 = vpack.c.b16 %v689, %v673
  %v754 = vpack.c.b16 %v690, %v674
  %v755 = vpack.c.b16 %v691, %v675
  %v756 = vpack.c.b16 %v692, %v676
  %v757 = vpack.c.b16 %v693, %v677
  %v758 = vpack.c.b16 %v694, %v678
  %v759 = vpack.c.b16 %v695, %v679
  %v760 = vpack.c.b16 %v696, %v680
  %v761 = vpack.c.b16 %v697, %v681
  %v762 = vpack.c.b16 %v698, %v682
  %v763 = vpack.c.b16 %v699, %v683
  %v764 = vpack.c.b16 %v700, %v684
  %v765 = vpack.c.b16 %v701, %v685
  %v766 = vpack.c.b16 %v702, %v686
  %v767 = vpack.c.b16 %v703, %v687
  %v768 = vpack.c.b16 %v704, %v688
  %v769 = vpack.c.b16 %v721, %v705
  %v770 = vpack.c.b16 %v722, %v706
  %v771 = vpack.c.b16 %v723, %v707
  %v772 = vpack.c.b16 %v724, %v708
  %v773 = vpack.c.b16 %v725, %v709
  %v774 = vpack.c.b16 %v726, %v710
  %v775 = vpack.c.b16 %v727, %v711
  %v776 = vpack.c.b16 %v728, %v712
  %v777 = vpack.c.b16 %v729, %v713
  %v778 = vpack.c.b16 %v730, %v714
  %v779 = vpack.c.b16 %v731, %v715
  %v780 = vpack.c.b16 %v732, %v716
  %v781 = vpack.c.b16 %v733, %v717
  %v782 = vpack.c.b16 %v734, %v718
  %v783 = vpack.c.b16 %v735, %v719
  %v784 = vpack.c.b16 %v736, %v720
  %v785 = vpack.c.b16 %v737, %v737
  %v786 = vpack.c.b16 %v738, %v738
  %v787 = vpack.c.b16 %v739, %v739
  %v788 = vpack.c.b16 %v740, %v740
  %v789 = vpack.c.b16 %v741, %v741
  %v790 = vpack.c.b16 %v742, %v742
  %v791 = vpack.c.b16 %v743, %v743
  %v792 = vpack.c.b16 %v744, %v744
  %v793 = vpack.c.b16 %v745, %v745
  %v794 = vpack.c.b16 %v746, %v746
  %v795 = vpack.c.b16 %v747, %v747
  %v796 = vpack.c.b16 %v748, %v748
  %v797 = vpack.c.b16 %v749, %v749
  %v798 = vpack.c.b16 %v750, %v750
  %v799 = vpack.c.b16 %v751, %v751
  %v800 = vpack.c.b16 %v752, %v752
  %vm833 = vcmask 293888
  %v835 = vsel %vm833, %v586, 0
  %vm837 = vcmask 1041408
  %v839 = vsel %vm837, %v785, 0
  %v842 = vsel %vm837, %v786, 0
  %v845 = vsel %vm837, %v787, 0
  %v848 = vsel %vm837, %v788, 0
  %v851 = vsel %vm837, %v789, 0
  %v854 = vsel %vm837, %v790, 0
  %v857 = vsel %vm837, %v791, 0
  %v860 = vsel %vm837, %v792, 0
  %v863 = vsel %vm837, %v793, 0
  %v866 = vsel %vm837, %v794, 0
  %v869 = vsel %vm837, %v795, 0
  %v872 = vsel %vm837, %v796, 0
  %v875 = vsel %vm837, %v797, 0
  %v878 = vsel %vm837, %v798, 0
  %v881 = vsel %vm837, %v799, 0
  %v884 = vsel %vm837, %v800, 0
  %886 = vmatprep.subr.bf16.mxu0 %v754
  %887 = vmatpush1.bf16.msra.mxu0 %v753
  %888 = vmatprep.subr.bf16.mxu0 %v770
  %889 = vmatpush1.bf16.msra.mxu0 %v769
  %890 = vmatprep.subr.bf16.mxu0 %v842
  %891 = vmatpush1.bf16.msra.mxu0 %v839
  %892 = vmatprep.subr.bf16.mxu0 0
  %893 = vmatpush1.bf16.msra.mxu0 0
  %894 = vmatprep.subr.bf16.mxu0 0
  %895 = vmatpush1.bf16.msra.mxu0 0
  %896 = vmatprep.subr.bf16.mxu0 0
  %897 = vmatpush1.bf16.msra.mxu0 0
  %898 = vmatprep.subr.bf16.mxu0 0
  %899 = vmatpush1.bf16.msra.mxu0 0
  %900 = vmatprep.subr.bf16.mxu0 0
  %901 = vmatpush1.bf16.msra.mxu0 0
  %902 = vmatprep.subr.bf16.mxu0 0
  %903 = vmatpush1.bf16.msra.mxu0 0
  %904 = vmatprep.subr.bf16.mxu0 0
  %905 = vmatpush1.bf16.msra.mxu0 0
  %906 = vmatprep.subr.bf16.mxu0 0
  %907 = vmatpush1.bf16.msra.mxu0 0
  %908 = vmatprep.subr.bf16.mxu0 0
  %909 = vmatpush1.bf16.msra.mxu0 0
  %910 = vmatprep.subr.bf16.mxu0 0
  %911 = vmatpush1.bf16.msra.mxu0 0
  %912 = vmatprep.subr.bf16.mxu0 0
  %913 = vmatpush1.bf16.msra.mxu0 0
  %914 = vmatprep.subr.bf16.mxu0 0
  %915 = vmatpush1.bf16.msra.mxu0 0
  %916 = vmatprep.subr.bf16.mxu0 0
  %917 = vmatpush1.bf16.msra.mxu0 0
  %918 = vmatprep.mubr.bf16.mxu0 0
  %919 = vmatmul.mubr.bf16.gmra.mrb[0].mxu0 %v835
  %v920 = vpop.f32.mrb[0].mxu0
  %v921 = vadd.f32 %v631, %v920
  %v922 = vpop.f32.mrb[0].mxu0
  %v923 = vadd.f32 %v631, %v922
  %v924 = vpop.f32.mrb[0].mxu0
  %v925 = vpop.f32.mrb[0].mxu0
  %926 = vdwg.mxu0
  %927 = vmatprep.subr.bf16.mxu0 %v756
  %928 = vmatpush1.bf16.msra.mxu0 %v755
  %929 = vmatprep.subr.bf16.mxu0 %v772
  %930 = vmatpush1.bf16.msra.mxu0 %v771
  %931 = vmatprep.subr.bf16.mxu0 %v848
  %932 = vmatpush1.bf16.msra.mxu0 %v845
  %933 = vmatprep.subr.bf16.mxu0 0
  %934 = vmatpush1.bf16.msra.mxu0 0
  %935 = vmatprep.subr.bf16.mxu0 0
  %936 = vmatpush1.bf16.msra.mxu0 0
  %937 = vmatprep.subr.bf16.mxu0 0
  %938 = vmatpush1.bf16.msra.mxu0 0
  %939 = vmatprep.subr.bf16.mxu0 0
  %940 = vmatpush1.bf16.msra.mxu0 0
  %941 = vmatprep.subr.bf16.mxu0 0
  %942 = vmatpush1.bf16.msra.mxu0 0
  %943 = vmatprep.subr.bf16.mxu0 0
  %944 = vmatpush1.bf16.msra.mxu0 0
  %945 = vmatprep.subr.bf16.mxu0 0
  %946 = vmatpush1.bf16.msra.mxu0 0
  %947 = vmatprep.subr.bf16.mxu0 0
  %948 = vmatpush1.bf16.msra.mxu0 0
  %949 = vmatprep.subr.bf16.mxu0 0
  %950 = vmatpush1.bf16.msra.mxu0 0
  %951 = vmatprep.subr.bf16.mxu0 0
  %952 = vmatpush1.bf16.msra.mxu0 0
  %953 = vmatprep.subr.bf16.mxu0 0
  %954 = vmatpush1.bf16.msra.mxu0 0
  %955 = vmatprep.subr.bf16.mxu0 0
  %956 = vmatpush1.bf16.msra.mxu0 0
  %957 = vmatprep.subr.bf16.mxu0 0
  %958 = vmatpush1.bf16.msra.mxu0 0
  %959 = vmatprep.mubr.bf16.mxu0 0
  %960 = vmatmul.mubr.bf16.gmra.mrb[0].mxu0 %v835
  %v961 = vpop.f32.mrb[0].mxu0
  %v962 = vadd.f32 %v631, %v961
  %v963 = vpop.f32.mrb[0].mxu0
  %v964 = vadd.f32 %v631, %v963
  %v965 = vpop.f32.mrb[0].mxu0
  %v966 = vpop.f32.mrb[0].mxu0
  %967 = vdwg.mxu0
  %968 = vmatprep.subr.bf16.mxu0 %v758
  %969 = vmatpush1.bf16.msra.mxu0 %v757
  %970 = vmatprep.subr.bf16.mxu0 %v774
  %971 = vmatpush1.bf16.msra.mxu0 %v773
  %972 = vmatprep.subr.bf16.mxu0 %v854
  %973 = vmatpush1.bf16.msra.mxu0 %v851
  %974 = vmatprep.subr.bf16.mxu0 0
  %975 = vmatpush1.bf16.msra.mxu0 0
  %976 = vmatprep.subr.bf16.mxu0 0
  %977 = vmatpush1.bf16.msra.mxu0 0
  %978 = vmatprep.subr.bf16.mxu0 0
  %979 = vmatpush1.bf16.msra.mxu0 0
  %980 = vmatprep.subr.bf16.mxu0 0
  %981 = vmatpush1.bf16.msra.mxu0 0
  %982 = vmatprep.subr.bf16.mxu0 0
  %983 = vmatpush1.bf16.msra.mxu0 0
  %984 = vmatprep.subr.bf16.mxu0 0
  %985 = vmatpush1.bf16.msra.mxu0 0
  %986 = vmatprep.subr.bf16.mxu0 0
  %987 = vmatpush1.bf16.msra.mxu0 0
  %988 = vmatprep.subr.bf16.mxu0 0
  %989 = vmatpush1.bf16.msra.mxu0 0
  %990 = vmatprep.subr.bf16.mxu0 0
  %991 = vmatpush1.bf16.msra.mxu0 0
  %992 = vmatprep.subr.bf16.mxu0 0
  %993 = vmatpush1.bf16.msra.mxu0 0
  %994 = vmatprep.subr.bf16.mxu0 0
  %995 = vmatpush1.bf16.msra.mxu0 0
  %996 = vmatprep.subr.bf16.mxu0 0
  %997 = vmatpush1.bf16.msra.mxu0 0
  %998 = vmatprep.subr.bf16.mxu0 0
  %999 = vmatpush1.bf16.msra.mxu0 0
  %1000 = vmatprep.mubr.bf16.mxu0 0
  %1001 = vmatmul.mubr.bf16.gmra.mrb[0].mxu0 %v835
  %v1002 = vpop.f32.mrb[0].mxu0
  %v1003 = vadd.f32 %v631, %v1002
  %v1004 = vpop.f32.mrb[0].mxu0
  %v1005 = vadd.f32 %v631, %v1004
  %v1006 = vpop.f32.mrb[0].mxu0
  %v1007 = vpop.f32.mrb[0].mxu0
  %1008 = vdwg.mxu0
  %1009 = vmatprep.subr.bf16.mxu0 %v760
  %1010 = vmatpush1.bf16.msra.mxu0 %v759
  %1011 = vmatprep.subr.bf16.mxu0 %v776
  %1012 = vmatpush1.bf16.msra.mxu0 %v775
  %1013 = vmatprep.subr.bf16.mxu0 %v860
  %1014 = vmatpush1.bf16.msra.mxu0 %v857
  %1015 = vmatprep.subr.bf16.mxu0 0
  %1016 = vmatpush1.bf16.msra.mxu0 0
  %1017 = vmatprep.subr.bf16.mxu0 0
  %1018 = vmatpush1.bf16.msra.mxu0 0
  %1019 = vmatprep.subr.bf16.mxu0 0
  %1020 = vmatpush1.bf16.msra.mxu0 0
  %1021 = vmatprep.subr.bf16.mxu0 0
  %1022 = vmatpush1.bf16.msra.mxu0 0
  %1023 = vmatprep.subr.bf16.mxu0 0
  %1024 = vmatpush1.bf16.msra.mxu0 0
  %1025 = vmatprep.subr.bf16.mxu0 0
  %1026 = vmatpush1.bf16.msra.mxu0 0
  %1027 = vmatprep.subr.bf16.mxu0 0
  %1028 = vmatpush1.bf16.msra.mxu0 0
  %1029 = vmatprep.subr.bf16.mxu0 0
  %1030 = vmatpush1.bf16.msra.mxu0 0
  %1031 = vmatprep.subr.bf16.mxu0 0
  %1032 = vmatpush1.bf16.msra.mxu0 0
  %1033 = vmatprep.subr.bf16.mxu0 0
  %1034 = vmatpush1.bf16.msra.mxu0 0
  %1035 = vmatprep.subr.bf16.mxu0 0
  %1036 = vmatpush1.bf16.msra.mxu0 0
  %1037 = vmatprep.subr.bf16.mxu0 0
  %1038 = vmatpush1.bf16.msra.mxu0 0
  %1039 = vmatprep.subr.bf16.mxu0 0
  %1040 = vmatpush1.bf16.msra.mxu0 0
  %1041 = vmatprep.mubr.bf16.mxu0 0
  %1042 = vmatmul.mubr.bf16.gmra.mrb[0].mxu0 %v835
  %v1043 = vpop.f32.mrb[0].mxu0
  %v1044 = vadd.f32 %v631, %v1043
  %v1045 = vpop.f32.mrb[0].mxu0
  %v1046 = vadd.f32 %v631, %v1045
  %v1047 = vpop.f32.mrb[0].mxu0
  %v1048 = vpop.f32.mrb[0].mxu0
  %1049 = vdwg.mxu0
  %1050 = vmatprep.subr.bf16.mxu0 %v762
  %1051 = vmatpush1.bf16.msra.mxu0 %v761
  %1052 = vmatprep.subr.bf16.mxu0 %v778
  %1053 = vmatpush1.bf16.msra.mxu0 %v777
  %1054 = vmatprep.subr.bf16.mxu0 %v866
  %1055 = vmatpush1.bf16.msra.mxu0 %v863
  %1056 = vmatprep.subr.bf16.mxu0 0
  %1057 = vmatpush1.bf16.msra.mxu0 0
  %1058 = vmatprep.subr.bf16.mxu0 0
  %1059 = vmatpush1.bf16.msra.mxu0 0
  %1060 = vmatprep.subr.bf16.mxu0 0
  %1061 = vmatpush1.bf16.msra.mxu0 0
  %1062 = vmatprep.subr.bf16.mxu0 0
  %1063 = vmatpush1.bf16.msra.mxu0 0
  %1064 = vmatprep.subr.bf16.mxu0 0
  %1065 = vmatpush1.bf16.msra.mxu0 0
  %1066 = vmatprep.subr.bf16.mxu0 0
  %1067 = vmatpush1.bf16.msra.mxu0 0
  %1068 = vmatprep.subr.bf16.mxu0 0
  %1069 = vmatpush1.bf16.msra.mxu0 0
  %1070 = vmatprep.subr.bf16.mxu0 0
  %1071 = vmatpush1.bf16.msra.mxu0 0
  %1072 = vmatprep.subr.bf16.mxu0 0
  %1073 = vmatpush1.bf16.msra.mxu0 0
  %1074 = vmatprep.subr.bf16.mxu0 0
  %1075 = vmatpush1.bf16.msra.mxu0 0
  %1076 = vmatprep.subr.bf16.mxu0 0
  %1077 = vmatpush1.bf16.msra.mxu0 0
  %1078 = vmatprep.subr.bf16.mxu0 0
  %1079 = vmatpush1.bf16.msra.mxu0 0
  %1080 = vmatprep.subr.bf16.mxu0 0
  %1081 = vmatpush1.bf16.msra.mxu0 0
  %1082 = vmatprep.mubr.bf16.mxu0 0
  %1083 = vmatmul.mubr.bf16.gmra.mrb[0].mxu0 %v835
  %v1084 = vpop.f32.mrb[0].mxu0
  %v1085 = vadd.f32 %v631, %v1084
  %v1086 = vpop.f32.mrb[0].mxu0
  %v1087 = vadd.f32 %v631, %v1086
  %v1088 = vpop.f32.mrb[0].mxu0
  %v1089 = vpop.f32.mrb[0].mxu0
  %1090 = vdwg.mxu0
  %1091 = vmatprep.subr.bf16.mxu0 %v764
  %1092 = vmatpush1.bf16.msra.mxu0 %v763
  %1093 = vmatprep.subr.bf16.mxu0 %v780
  %1094 = vmatpush1.bf16.msra.mxu0 %v779
  %1095 = vmatprep.subr.bf16.mxu0 %v872
  %1096 = vmatpush1.bf16.msra.mxu0 %v869
  %1097 = vmatprep.subr.bf16.mxu0 0
  %1098 = vmatpush1.bf16.msra.mxu0 0
  %1099 = vmatprep.subr.bf16.mxu0 0
  %1100 = vmatpush1.bf16.msra.mxu0 0
  %1101 = vmatprep.subr.bf16.mxu0 0
  %1102 = vmatpush1.bf16.msra.mxu0 0
  %1103 = vmatprep.subr.bf16.mxu0 0
  %1104 = vmatpush1.bf16.msra.mxu0 0
  %1105 = vmatprep.subr.bf16.mxu0 0
  %1106 = vmatpush1.bf16.msra.mxu0 0
  %1107 = vmatprep.subr.bf16.mxu0 0
  %1108 = vmatpush1.bf16.msra.mxu0 0
  %1109 = vmatprep.subr.bf16.mxu0 0
  %1110 = vmatpush1.bf16.msra.mxu0 0
  %1111 = vmatprep.subr.bf16.mxu0 0
  %1112 = vmatpush1.bf16.msra.mxu0 0
  %1113 = vmatprep.subr.bf16.mxu0 0
  %1114 = vmatpush1.bf16.msra.mxu0 0
  %1115 = vmatprep.subr.bf16.mxu0 0
  %1116 = vmatpush1.bf16.msra.mxu0 0
  %1117 = vmatprep.subr.bf16.mxu0 0
  %1118 = vmatpush1.bf16.msra.mxu0 0
  %1119 = vmatprep.subr.bf16.mxu0 0
  %1120 = vmatpush1.bf16.msra.mxu0 0
  %1121 = vmatprep.subr.bf16.mxu0 0
  %1122 = vmatpush1.bf16.msra.mxu0 0
  %1123 = vmatprep.mubr.bf16.mxu0 0
  %1124 = vmatmul.mubr.bf16.gmra.mrb[0].mxu0 %v835
  %v1125 = vpop.f32.mrb[0].mxu0
  %v1126 = vadd.f32 %v631, %v1125
  %v1127 = vpop.f32.mrb[0].mxu0
  %v1128 = vadd.f32 %v631, %v1127
  %v1129 = vpop.f32.mrb[0].mxu0
  %v1130 = vpop.f32.mrb[0].mxu0
  %1131 = vdwg.mxu0
  %1132 = vmatprep.subr.bf16.mxu0 %v766
  %1133 = vmatpush1.bf16.msra.mxu0 %v765
  %1134 = vmatprep.subr.bf16.mxu0 %v782
  %1135 = vmatpush1.bf16.msra.mxu0 %v781
  %1136 = vmatprep.subr.bf16.mxu0 %v878
  %1137 = vmatpush1.bf16.msra.mxu0 %v875
  %1138 = vmatprep.subr.bf16.mxu0 0
  %1139 = vmatpush1.bf16.msra.mxu0 0
  %1140 = vmatprep.subr.bf16.mxu0 0
  %1141 = vmatpush1.bf16.msra.mxu0 0
  %1142 = vmatprep.subr.bf16.mxu0 0
  %1143 = vmatpush1.bf16.msra.mxu0 0
  %1144 = vmatprep.subr.bf16.mxu0 0
  %1145 = vmatpush1.bf16.msra.mxu0 0
  %1146 = vmatprep.subr.bf16.mxu0 0
  %1147 = vmatpush1.bf16.msra.mxu0 0
  %1148 = vmatprep.subr.bf16.mxu0 0
  %1149 = vmatpush1.bf16.msra.mxu0 0
  %1150 = vmatprep.subr.bf16.mxu0 0
  %1151 = vmatpush1.bf16.msra.mxu0 0
  %1152 = vmatprep.subr.bf16.mxu0 0
  %1153 = vmatpush1.bf16.msra.mxu0 0
  %1154 = vmatprep.subr.bf16.mxu0 0
  %1155 = vmatpush1.bf16.msra.mxu0 0
  %1156 = vmatprep.subr.bf16.mxu0 0
  %1157 = vmatpush1.bf16.msra.mxu0 0
  %1158 = vmatprep.subr.bf16.mxu0 0
  %1159 = vmatpush1.bf16.msra.mxu0 0
  %1160 = vmatprep.subr.bf16.mxu0 0
  %1161 = vmatpush1.bf16.msra.mxu0 0
  %1162 = vmatprep.subr.bf16.mxu0 0
  %1163 = vmatpush1.bf16.msra.mxu0 0
  %1164 = vmatprep.mubr.bf16.mxu0 0
  %1165 = vmatmul.mubr.bf16.gmra.mrb[0].mxu0 %v835
  %v1166 = vpop.f32.mrb[0].mxu0
  %v1167 = vadd.f32 %v631, %v1166
  %v1168 = vpop.f32.mrb[0].mxu0
  %v1169 = vadd.f32 %v631, %v1168
  %v1170 = vpop.f32.mrb[0].mxu0
  %v1171 = vpop.f32.mrb[0].mxu0
  %1172 = vdwg.mxu0
  %1173 = vmatprep.subr.bf16.mxu0 %v768
  %1174 = vmatpush1.bf16.msra.mxu0 %v767
  %1175 = vmatprep.subr.bf16.mxu0 %v784
  %1176 = vmatpush1.bf16.msra.mxu0 %v783
  %1177 = vmatprep.subr.bf16.mxu0 %v884
  %1178 = vmatpush1.bf16.msra.mxu0 %v881
  %1179 = vmatprep.subr.bf16.mxu0 0
  %1180 = vmatpush1.bf16.msra.mxu0 0
  %1181 = vmatprep.subr.bf16.mxu0 0
  %1182 = vmatpush1.bf16.msra.mxu0 0
  %1183 = vmatprep.subr.bf16.mxu0 0
  %1184 = vmatpush1.bf16.msra.mxu0 0
  %1185 = vmatprep.subr.bf16.mxu0 0
  %1186 = vmatpush1.bf16.msra.mxu0 0
  %1187 = vmatprep.subr.bf16.mxu0 0
  %1188 = vmatpush1.bf16.msra.mxu0 0
  %1189 = vmatprep.subr.bf16.mxu0 0
  %1190 = vmatpush1.bf16.msra.mxu0 0
  %1191 = vmatprep.subr.bf16.mxu0 0
  %1192 = vmatpush1.bf16.msra.mxu0 0
  %1193 = vmatprep.subr.bf16.mxu0 0
  %1194 = vmatpush1.bf16.msra.mxu0 0
  %1195 = vmatprep.subr.bf16.mxu0 0
  %1196 = vmatpush1.bf16.msra.mxu0 0
  %1197 = vmatprep.subr.bf16.mxu0 0
  %1198 = vmatpush1.bf16.msra.mxu0 0
  %1199 = vmatprep.subr.bf16.mxu0 0
  %1200 = vmatpush1.bf16.msra.mxu0 0
  %1201 = vmatprep.subr.bf16.mxu0 0
  %1202 = vmatpush1.bf16.msra.mxu0 0
  %1203 = vmatprep.subr.bf16.mxu0 0
  %1204 = vmatpush1.bf16.msra.mxu0 0
  %1205 = vmatprep.mubr.bf16.mxu0 0
  %1206 = vmatmul.mubr.bf16.gmra.mrb[0].mxu0 %v835
  %v1207 = vpop.f32.mrb[0].mxu0
  %v1208 = vadd.f32 %v631, %v1207
  %v1209 = vpop.f32.mrb[0].mxu0
  %v1210 = vadd.f32 %v631, %v1209
  %v1211 = vpop.f32.mrb[0].mxu0
  %v1212 = vpop.f32.mrb[0].mxu0
  %1213 = vdwg.mxu0
  %v1214 = vld [vmem:[%s7] sm:$0xf]
  %v1215 = vld [vmem:[%s8] sm:$0xf]
  %v1216 = vsel %vm170, %v921, 0.0
  %v1217 = vsel %vm170, %v923, 0.0
  %v1218 = vadd.f32 %v1216, %v1217
  %v1219 = vsel %vm170, %v962, 0.0
  %v1220 = vadd.f32 %v1218, %v1219
  %v1221 = vsel %vm170, %v964, 0.0
  %v1222 = vadd.f32 %v1220, %v1221
  %v1223 = vsel %vm170, %v1003, 0.0
  %v1224 = vadd.f32 %v1222, %v1223
  %v1225 = vsel %vm170, %v1005, 0.0
  %v1226 = vadd.f32 %v1224, %v1225
  %v1227 = vsel %vm170, %v1044, 0.0
  %v1228 = vadd.f32 %v1226, %v1227
  %v1229 = vsel %vm170, %v1046, 0.0
  %v1230 = vadd.f32 %v1228, %v1229
  %v1231 = vsel %vm170, %v1085, 0.0
  %v1232 = vadd.f32 %v1230, %v1231
  %v1233 = vsel %vm170, %v1087, 0.0
  %v1234 = vadd.f32 %v1232, %v1233
  %v1235 = vsel %vm170, %v1126, 0.0
  %v1236 = vadd.f32 %v1234, %v1235
  %v1237 = vsel %vm170, %v1128, 0.0
  %v1238 = vadd.f32 %v1236, %v1237
  %v1239 = vsel %vm170, %v1167, 0.0
  %v1240 = vadd.f32 %v1238, %v1239
  %v1241 = vsel %vm170, %v1169, 0.0
  %v1242 = vadd.f32 %v1240, %v1241
  %v1243 = vsel %vm170, %v1208, 0.0
  %v1244 = vadd.f32 %v1242, %v1243
  %v1245 = vsel %vm170, %v1210, 0.0
  %v1246 = vadd.f32 %v1244, %v1245
  %1247 = vadd.xlane.f32.xlu0 %v1246
  %v1248 = vpop.xlane.xlu0 %1247
  %v1249 = vmul.f32 %v1248, 0.00048828125
  %v1250 = vsub.f32 %v921, %v1249
  %v1251 = vsub.f32 %v923, %v1249
  %v1252 = vsub.f32 %v962, %v1249
  %v1253 = vsub.f32 %v964, %v1249
  %v1254 = vsub.f32 %v1003, %v1249
  %v1255 = vsub.f32 %v1005, %v1249
  %v1256 = vsub.f32 %v1044, %v1249
  %v1257 = vsub.f32 %v1046, %v1249
  %v1258 = vsub.f32 %v1085, %v1249
  %v1259 = vsub.f32 %v1087, %v1249
  %v1260 = vsub.f32 %v1126, %v1249
  %v1261 = vsub.f32 %v1128, %v1249
  %v1262 = vsub.f32 %v1167, %v1249
  %v1263 = vsub.f32 %v1169, %v1249
  %v1264 = vsub.f32 %v1208, %v1249
  %v1265 = vsub.f32 %v1210, %v1249
  %v1266 = vmul.f32 %v1250, %v1250
  %v1267 = vmul.f32 %v1251, %v1251
  %v1268 = vmul.f32 %v1252, %v1252
  %v1269 = vmul.f32 %v1253, %v1253
  %v1270 = vmul.f32 %v1254, %v1254
  %v1271 = vmul.f32 %v1255, %v1255
  %v1272 = vmul.f32 %v1256, %v1256
  %v1273 = vmul.f32 %v1257, %v1257
  %v1274 = vmul.f32 %v1258, %v1258
  %v1275 = vmul.f32 %v1259, %v1259
  %v1276 = vmul.f32 %v1260, %v1260
  %v1277 = vmul.f32 %v1261, %v1261
  %v1278 = vmul.f32 %v1262, %v1262
  %v1279 = vmul.f32 %v1263, %v1263
  %v1280 = vmul.f32 %v1264, %v1264
  %v1281 = vmul.f32 %v1265, %v1265
  %v1282 = vsel %vm170, %v1266, 0.0
  %v1283 = vsel %vm170, %v1267, 0.0
  %v1284 = vadd.f32 %v1282, %v1283
  %v1285 = vsel %vm170, %v1268, 0.0
  %v1286 = vadd.f32 %v1284, %v1285
  %v1287 = vsel %vm170, %v1269, 0.0
  %v1288 = vadd.f32 %v1286, %v1287
  %v1289 = vsel %vm170, %v1270, 0.0
  %v1290 = vadd.f32 %v1288, %v1289
  %v1291 = vsel %vm170, %v1271, 0.0
  %v1292 = vadd.f32 %v1290, %v1291
  %v1293 = vsel %vm170, %v1272, 0.0
  %v1294 = vadd.f32 %v1292, %v1293
  %v1295 = vsel %vm170, %v1273, 0.0
  %v1296 = vadd.f32 %v1294, %v1295
  %v1297 = vsel %vm170, %v1274, 0.0
  %v1298 = vadd.f32 %v1296, %v1297
  %v1299 = vsel %vm170, %v1275, 0.0
  %v1300 = vadd.f32 %v1298, %v1299
  %v1301 = vsel %vm170, %v1276, 0.0
  %v1302 = vadd.f32 %v1300, %v1301
  %v1303 = vsel %vm170, %v1277, 0.0
  %v1304 = vadd.f32 %v1302, %v1303
  %v1305 = vsel %vm170, %v1278, 0.0
  %v1306 = vadd.f32 %v1304, %v1305
  %v1307 = vsel %vm170, %v1279, 0.0
  %v1308 = vadd.f32 %v1306, %v1307
  %v1309 = vsel %vm170, %v1280, 0.0
  %v1310 = vadd.f32 %v1308, %v1309
  %v1311 = vsel %vm170, %v1281, 0.0
  %v1312 = vadd.f32 %v1310, %v1311
  %1313 = vadd.xlane.f32.xlu0 %v1312
  %v1314 = vpop.xlane.xlu0 %1313
  %v1315 = vmul.f32 %v1314, 0.00048828125
  %v1316 = vadd.f32 %v1315, 1e-05
  %v1317 = vrsqrt.pop %v1316
  %v1318 = vmul.f32 %v1250, %v1317
  %v1319 = vmul.f32 %v1251, %v1317
  %v1320 = vmul.f32 %v1252, %v1317
  %v1321 = vmul.f32 %v1253, %v1317
  %v1322 = vmul.f32 %v1254, %v1317
  %v1323 = vmul.f32 %v1255, %v1317
  %v1324 = vmul.f32 %v1256, %v1317
  %v1325 = vmul.f32 %v1257, %v1317
  %v1326 = vmul.f32 %v1258, %v1317
  %v1327 = vmul.f32 %v1259, %v1317
  %v1328 = vmul.f32 %v1260, %v1317
  %v1329 = vmul.f32 %v1261, %v1317
  %v1330 = vmul.f32 %v1262, %v1317
  %v1331 = vmul.f32 %v1263, %v1317
  %v1332 = vmul.f32 %v1264, %v1317
  %v1333 = vmul.f32 %v1265, %v1317
  %1335 = vset.pattern.permute.xlu0 0
  %1336 = vperm.xlu0 %1335, %v1214
  %v1337 = vpop.permute.xlu0 %1336
  %v1339 = vmul.f32 %v1318, %v1337
  %v1340 = vmul.f32 %v1319, %v1337
  %v1341 = vmul.f32 %v1320, %v1337
  %v1342 = vmul.f32 %v1321, %v1337
  %v1343 = vmul.f32 %v1322, %v1337
  %v1344 = vmul.f32 %v1323, %v1337
  %v1345 = vmul.f32 %v1324, %v1337
  %v1346 = vmul.f32 %v1325, %v1337
  %v1347 = vmul.f32 %v1326, %v1337
  %v1348 = vmul.f32 %v1327, %v1337
  %v1349 = vmul.f32 %v1328, %v1337
  %v1350 = vmul.f32 %v1329, %v1337
  %v1351 = vmul.f32 %v1330, %v1337
  %v1352 = vmul.f32 %v1331, %v1337
  %v1353 = vmul.f32 %v1332, %v1337
  %v1354 = vmul.f32 %v1333, %v1337
  %1356 = vset.pattern.permute.xlu0 0
  %1357 = vperm.xlu0 %1356, %v1215
  %v1358 = vpop.permute.xlu0 %1357
  %v1360 = vadd.f32 %v1339, %v1358
  %v1361 = vadd.f32 %v1340, %v1358
  %v1362 = vadd.f32 %v1341, %v1358
  %v1363 = vadd.f32 %v1342, %v1358
  %v1364 = vadd.f32 %v1343, %v1358
  %v1365 = vadd.f32 %v1344, %v1358
  %v1366 = vadd.f32 %v1345, %v1358
  %v1367 = vadd.f32 %v1346, %v1358
  %v1368 = vadd.f32 %v1347, %v1358
  %v1369 = vadd.f32 %v1348, %v1358
  %v1370 = vadd.f32 %v1349, %v1358
  %v1371 = vadd.f32 %v1350, %v1358
  %v1372 = vadd.f32 %v1351, %v1358
  %v1373 = vadd.f32 %v1352, %v1358
  %v1374 = vadd.f32 %v1353, %v1358
  %v1375 = vadd.f32 %v1354, %v1358
  %v1376 = vmax.f32 %v1360, 0.0
  %v1377 = vmax.f32 %v1361, 0.0
  %v1378 = vmax.f32 %v1362, 0.0
  %v1379 = vmax.f32 %v1363, 0.0
  %v1380 = vmax.f32 %v1364, 0.0
  %v1381 = vmax.f32 %v1365, 0.0
  %v1382 = vmax.f32 %v1366, 0.0
  %v1383 = vmax.f32 %v1367, 0.0
  %v1384 = vmax.f32 %v1368, 0.0
  %v1385 = vmax.f32 %v1369, 0.0
  %v1386 = vmax.f32 %v1370, 0.0
  %v1387 = vmax.f32 %v1371, 0.0
  %v1388 = vmax.f32 %v1372, 0.0
  %v1389 = vmax.f32 %v1373, 0.0
  %v1390 = vmax.f32 %v1374, 0.0
  %v1391 = vmax.f32 %v1375, 0.0
  %v1392 = vld [vmem:[%s9] sm:$0xf]
  %v1393 = vpack.c.bf16 %v1376, %v1376
  %v1394 = vpack.c.bf16 %v1377, %v1377
  %v1395 = vpack.c.bf16 %v1378, %v1378
  %v1396 = vpack.c.bf16 %v1379, %v1379
  %v1397 = vpack.c.bf16 %v1380, %v1380
  %v1398 = vpack.c.bf16 %v1381, %v1381
  %v1399 = vpack.c.bf16 %v1382, %v1382
  %v1400 = vpack.c.bf16 %v1383, %v1383
  %v1401 = vpack.c.bf16 %v1384, %v1384
  %v1402 = vpack.c.bf16 %v1385, %v1385
  %v1403 = vpack.c.bf16 %v1386, %v1386
  %v1404 = vpack.c.bf16 %v1387, %v1387
  %v1405 = vpack.c.bf16 %v1388, %v1388
  %v1406 = vpack.c.bf16 %v1389, %v1389
  %v1407 = vpack.c.bf16 %v1390, %v1390
  %v1408 = vpack.c.bf16 %v1391, %v1391
  %v1409 = vld [vmem:[%s10] sm:$0xff]
  %1411 = vset.pattern.permute.xlu0 0
  %1412 = vperm.xlu0 %1411, %v1409
  %v1413 = vpop.permute.xlu0 %1412
  %vm1415 = vcmask 31744
  %v1417 = vsel %vm1415, %v1392, 0
  %v1420 = vsel %vm837, %v1393, 0
  %v1423 = vsel %vm837, %v1394, 0
  %v1426 = vsel %vm837, %v1395, 0
  %v1429 = vsel %vm837, %v1396, 0
  %v1432 = vsel %vm837, %v1397, 0
  %v1435 = vsel %vm837, %v1398, 0
  %v1438 = vsel %vm837, %v1399, 0
  %v1441 = vsel %vm837, %v1400, 0
  %v1444 = vsel %vm837, %v1401, 0
  %v1447 = vsel %vm837, %v1402, 0
  %v1450 = vsel %vm837, %v1403, 0
  %v1453 = vsel %vm837, %v1404, 0
  %v1456 = vsel %vm837, %v1405, 0
  %v1459 = vsel %vm837, %v1406, 0
  %v1462 = vsel %vm837, %v1407, 0
  %v1465 = vsel %vm837, %v1408, 0
  %1467 = vmatprep.subr.bf16.mxu0 %v1423
  %1468 = vmatpush1.bf16.msra.mxu0 %v1420
  %1469 = vmatprep.subr.bf16.mxu0 0
  %1470 = vmatpush1.bf16.msra.mxu0 0
  %1471 = vmatprep.subr.bf16.mxu0 0
  %1472 = vmatpush1.bf16.msra.mxu0 0
  %1473 = vmatprep.subr.bf16.mxu0 0
  %1474 = vmatpush1.bf16.msra.mxu0 0
  %1475 = vmatprep.subr.bf16.mxu0 0
  %1476 = vmatpush1.bf16.msra.mxu0 0
  %1477 = vmatprep.subr.bf16.mxu0 0
  %1478 = vmatpush1.bf16.msra.mxu0 0
  %1479 = vmatprep.subr.bf16.mxu0 0
  %1480 = vmatpush1.bf16.msra.mxu0 0
  %1481 = vmatprep.subr.bf16.mxu0 0
  %1482 = vmatpush1.bf16.msra.mxu0 0
  %1483 = vmatprep.subr.bf16.mxu0 0
  %1484 = vmatpush1.bf16.msra.mxu0 0
  %1485 = vmatprep.subr.bf16.mxu0 0
  %1486 = vmatpush1.bf16.msra.mxu0 0
  %1487 = vmatprep.subr.bf16.mxu0 0
  %1488 = vmatpush1.bf16.msra.mxu0 0
  %1489 = vmatprep.subr.bf16.mxu0 0
  %1490 = vmatpush1.bf16.msra.mxu0 0
  %1491 = vmatprep.subr.bf16.mxu0 0
  %1492 = vmatpush1.bf16.msra.mxu0 0
  %1493 = vmatprep.subr.bf16.mxu0 0
  %1494 = vmatpush1.bf16.msra.mxu0 0
  %1495 = vmatprep.subr.bf16.mxu0 0
  %1496 = vmatpush1.bf16.msra.mxu0 0
  %1497 = vmatprep.subr.bf16.mxu0 0
  %1498 = vmatpush1.bf16.msra.mxu0 0
  %1499 = vmatprep.mubr.bf16.mxu0 0
  %1500 = vmatmul.mubr.bf16.gmra.mrb[0].mxu0 %v1417
  %v1501 = vpop.f32.mrb[0].mxu0
  %v1502 = vadd.f32 %v1413, %v1501
  %v1503 = vpop.f32.mrb[0].mxu0
  %v1504 = vadd.f32 %v1413, %v1503
  %v1505 = vpop.f32.mrb[0].mxu0
  %v1506 = vpop.f32.mrb[0].mxu0
  %1507 = vdwg.mxu0
  %1508 = vmatprep.subr.bf16.mxu0 %v1429
  %1509 = vmatpush1.bf16.msra.mxu0 %v1426
  %1510 = vmatprep.subr.bf16.mxu0 0
  %1511 = vmatpush1.bf16.msra.mxu0 0
  %1512 = vmatprep.subr.bf16.mxu0 0
  %1513 = vmatpush1.bf16.msra.mxu0 0
  %1514 = vmatprep.subr.bf16.mxu0 0
  %1515 = vmatpush1.bf16.msra.mxu0 0
  %1516 = vmatprep.subr.bf16.mxu0 0
  %1517 = vmatpush1.bf16.msra.mxu0 0
  %1518 = vmatprep.subr.bf16.mxu0 0
  %1519 = vmatpush1.bf16.msra.mxu0 0
  %1520 = vmatprep.subr.bf16.mxu0 0
  %1521 = vmatpush1.bf16.msra.mxu0 0
  %1522 = vmatprep.subr.bf16.mxu0 0
  %1523 = vmatpush1.bf16.msra.mxu0 0
  %1524 = vmatprep.subr.bf16.mxu0 0
  %1525 = vmatpush1.bf16.msra.mxu0 0
  %1526 = vmatprep.subr.bf16.mxu0 0
  %1527 = vmatpush1.bf16.msra.mxu0 0
  %1528 = vmatprep.subr.bf16.mxu0 0
  %1529 = vmatpush1.bf16.msra.mxu0 0
  %1530 = vmatprep.subr.bf16.mxu0 0
  %1531 = vmatpush1.bf16.msra.mxu0 0
  %1532 = vmatprep.subr.bf16.mxu0 0
  %1533 = vmatpush1.bf16.msra.mxu0 0
  %1534 = vmatprep.subr.bf16.mxu0 0
  %1535 = vmatpush1.bf16.msra.mxu0 0
  %1536 = vmatprep.subr.bf16.mxu0 0
  %1537 = vmatpush1.bf16.msra.mxu0 0
  %1538 = vmatprep.subr.bf16.mxu0 0
  %1539 = vmatpush1.bf16.msra.mxu0 0
  %1540 = vmatprep.mubr.bf16.mxu0 0
  %1541 = vmatmul.mubr.bf16.gmra.mrb[0].mxu0 %v1417
  %v1542 = vpop.f32.mrb[0].mxu0
  %v1543 = vadd.f32 %v1413, %v1542
  %v1544 = vpop.f32.mrb[0].mxu0
  %v1545 = vadd.f32 %v1413, %v1544
  %v1546 = vpop.f32.mrb[0].mxu0
  %v1547 = vpop.f32.mrb[0].mxu0
  %1548 = vdwg.mxu0
  %1549 = vmatprep.subr.bf16.mxu0 %v1435
  %1550 = vmatpush1.bf16.msra.mxu0 %v1432
  %1551 = vmatprep.subr.bf16.mxu0 0
  %1552 = vmatpush1.bf16.msra.mxu0 0
  %1553 = vmatprep.subr.bf16.mxu0 0
  %1554 = vmatpush1.bf16.msra.mxu0 0
  %1555 = vmatprep.subr.bf16.mxu0 0
  %1556 = vmatpush1.bf16.msra.mxu0 0
  %1557 = vmatprep.subr.bf16.mxu0 0
  %1558 = vmatpush1.bf16.msra.mxu0 0
  %1559 = vmatprep.subr.bf16.mxu0 0
  %1560 = vmatpush1.bf16.msra.mxu0 0
  %1561 = vmatprep.subr.bf16.mxu0 0
  %1562 = vmatpush1.bf16.msra.mxu0 0
  %1563 = vmatprep.subr.bf16.mxu0 0
  %1564 = vmatpush1.bf16.msra.mxu0 0
  %1565 = vmatprep.subr.bf16.mxu0 0
  %1566 = vmatpush1.bf16.msra.mxu0 0
  %1567 = vmatprep.subr.bf16.mxu0 0
  %1568 = vmatpush1.bf16.msra.mxu0 0
  %1569 = vmatprep.subr.bf16.mxu0 0
  %1570 = vmatpush1.bf16.msra.mxu0 0
  %1571 = vmatprep.subr.bf16.mxu0 0
  %1572 = vmatpush1.bf16.msra.mxu0 0
  %1573 = vmatprep.subr.bf16.mxu0 0
  %1574 = vmatpush1.bf16.msra.mxu0 0
  %1575 = vmatprep.subr.bf16.mxu0 0
  %1576 = vmatpush1.bf16.msra.mxu0 0
  %1577 = vmatprep.subr.bf16.mxu0 0
  %1578 = vmatpush1.bf16.msra.mxu0 0
  %1579 = vmatprep.subr.bf16.mxu0 0
  %1580 = vmatpush1.bf16.msra.mxu0 0
  %1581 = vmatprep.mubr.bf16.mxu0 0
  %1582 = vmatmul.mubr.bf16.gmra.mrb[0].mxu0 %v1417
  %v1583 = vpop.f32.mrb[0].mxu0
  %v1584 = vadd.f32 %v1413, %v1583
  %v1585 = vpop.f32.mrb[0].mxu0
  %v1586 = vadd.f32 %v1413, %v1585
  %v1587 = vpop.f32.mrb[0].mxu0
  %v1588 = vpop.f32.mrb[0].mxu0
  %1589 = vdwg.mxu0
  %1590 = vmatprep.subr.bf16.mxu0 %v1441
  %1591 = vmatpush1.bf16.msra.mxu0 %v1438
  %1592 = vmatprep.subr.bf16.mxu0 0
  %1593 = vmatpush1.bf16.msra.mxu0 0
  %1594 = vmatprep.subr.bf16.mxu0 0
  %1595 = vmatpush1.bf16.msra.mxu0 0
  %1596 = vmatprep.subr.bf16.mxu0 0
  %1597 = vmatpush1.bf16.msra.mxu0 0
  %1598 = vmatprep.subr.bf16.mxu0 0
  %1599 = vmatpush1.bf16.msra.mxu0 0
  %1600 = vmatprep.subr.bf16.mxu0 0
  %1601 = vmatpush1.bf16.msra.mxu0 0
  %1602 = vmatprep.subr.bf16.mxu0 0
  %1603 = vmatpush1.bf16.msra.mxu0 0
  %1604 = vmatprep.subr.bf16.mxu0 0
  %1605 = vmatpush1.bf16.msra.mxu0 0
  %1606 = vmatprep.subr.bf16.mxu0 0
  %1607 = vmatpush1.bf16.msra.mxu0 0
  %1608 = vmatprep.subr.bf16.mxu0 0
  %1609 = vmatpush1.bf16.msra.mxu0 0
  %1610 = vmatprep.subr.bf16.mxu0 0
  %1611 = vmatpush1.bf16.msra.mxu0 0
  %1612 = vmatprep.subr.bf16.mxu0 0
  %1613 = vmatpush1.bf16.msra.mxu0 0
  %1614 = vmatprep.subr.bf16.mxu0 0
  %1615 = vmatpush1.bf16.msra.mxu0 0
  %1616 = vmatprep.subr.bf16.mxu0 0
  %1617 = vmatpush1.bf16.msra.mxu0 0
  %1618 = vmatprep.subr.bf16.mxu0 0
  %1619 = vmatpush1.bf16.msra.mxu0 0
  %1620 = vmatprep.subr.bf16.mxu0 0
  %1621 = vmatpush1.bf16.msra.mxu0 0
  %1622 = vmatprep.mubr.bf16.mxu0 0
  %1623 = vmatmul.mubr.bf16.gmra.mrb[0].mxu0 %v1417
  %v1624 = vpop.f32.mrb[0].mxu0
  %v1625 = vadd.f32 %v1413, %v1624
  %v1626 = vpop.f32.mrb[0].mxu0
  %v1627 = vadd.f32 %v1413, %v1626
  %v1628 = vpop.f32.mrb[0].mxu0
  %v1629 = vpop.f32.mrb[0].mxu0
  %1630 = vdwg.mxu0
  %1631 = vmatprep.subr.bf16.mxu0 %v1447
  %1632 = vmatpush1.bf16.msra.mxu0 %v1444
  %1633 = vmatprep.subr.bf16.mxu0 0
  %1634 = vmatpush1.bf16.msra.mxu0 0
  %1635 = vmatprep.subr.bf16.mxu0 0
  %1636 = vmatpush1.bf16.msra.mxu0 0
  %1637 = vmatprep.subr.bf16.mxu0 0
  %1638 = vmatpush1.bf16.msra.mxu0 0
  %1639 = vmatprep.subr.bf16.mxu0 0
  %1640 = vmatpush1.bf16.msra.mxu0 0
  %1641 = vmatprep.subr.bf16.mxu0 0
  %1642 = vmatpush1.bf16.msra.mxu0 0
  %1643 = vmatprep.subr.bf16.mxu0 0
  %1644 = vmatpush1.bf16.msra.mxu0 0
  %1645 = vmatprep.subr.bf16.mxu0 0
  %1646 = vmatpush1.bf16.msra.mxu0 0
  %1647 = vmatprep.subr.bf16.mxu0 0
  %1648 = vmatpush1.bf16.msra.mxu0 0
  %1649 = vmatprep.subr.bf16.mxu0 0
  %1650 = vmatpush1.bf16.msra.mxu0 0
  %1651 = vmatprep.subr.bf16.mxu0 0
  %1652 = vmatpush1.bf16.msra.mxu0 0
  %1653 = vmatprep.subr.bf16.mxu0 0
  %1654 = vmatpush1.bf16.msra.mxu0 0
  %1655 = vmatprep.subr.bf16.mxu0 0
  %1656 = vmatpush1.bf16.msra.mxu0 0
  %1657 = vmatprep.subr.bf16.mxu0 0
  %1658 = vmatpush1.bf16.msra.mxu0 0
  %1659 = vmatprep.subr.bf16.mxu0 0
  %1660 = vmatpush1.bf16.msra.mxu0 0
  %1661 = vmatprep.subr.bf16.mxu0 0
  %1662 = vmatpush1.bf16.msra.mxu0 0
  %1663 = vmatprep.mubr.bf16.mxu0 0
  %1664 = vmatmul.mubr.bf16.gmra.mrb[0].mxu0 %v1417
  %v1665 = vpop.f32.mrb[0].mxu0
  %v1666 = vadd.f32 %v1413, %v1665
  %v1667 = vpop.f32.mrb[0].mxu0
  %v1668 = vadd.f32 %v1413, %v1667
  %v1669 = vpop.f32.mrb[0].mxu0
  %v1670 = vpop.f32.mrb[0].mxu0
  %1671 = vdwg.mxu0
  %1672 = vmatprep.subr.bf16.mxu0 %v1453
  %1673 = vmatpush1.bf16.msra.mxu0 %v1450
  %1674 = vmatprep.subr.bf16.mxu0 0
  %1675 = vmatpush1.bf16.msra.mxu0 0
  %1676 = vmatprep.subr.bf16.mxu0 0
  %1677 = vmatpush1.bf16.msra.mxu0 0
  %1678 = vmatprep.subr.bf16.mxu0 0
  %1679 = vmatpush1.bf16.msra.mxu0 0
  %1680 = vmatprep.subr.bf16.mxu0 0
  %1681 = vmatpush1.bf16.msra.mxu0 0
  %1682 = vmatprep.subr.bf16.mxu0 0
  %1683 = vmatpush1.bf16.msra.mxu0 0
  %1684 = vmatprep.subr.bf16.mxu0 0
  %1685 = vmatpush1.bf16.msra.mxu0 0
  %1686 = vmatprep.subr.bf16.mxu0 0
  %1687 = vmatpush1.bf16.msra.mxu0 0
  %1688 = vmatprep.subr.bf16.mxu0 0
  %1689 = vmatpush1.bf16.msra.mxu0 0
  %1690 = vmatprep.subr.bf16.mxu0 0
  %1691 = vmatpush1.bf16.msra.mxu0 0
  %1692 = vmatprep.subr.bf16.mxu0 0
  %1693 = vmatpush1.bf16.msra.mxu0 0
  %1694 = vmatprep.subr.bf16.mxu0 0
  %1695 = vmatpush1.bf16.msra.mxu0 0
  %1696 = vmatprep.subr.bf16.mxu0 0
  %1697 = vmatpush1.bf16.msra.mxu0 0
  %1698 = vmatprep.subr.bf16.mxu0 0
  %1699 = vmatpush1.bf16.msra.mxu0 0
  %1700 = vmatprep.subr.bf16.mxu0 0
  %1701 = vmatpush1.bf16.msra.mxu0 0
  %1702 = vmatprep.subr.bf16.mxu0 0
  %1703 = vmatpush1.bf16.msra.mxu0 0
  %1704 = vmatprep.mubr.bf16.mxu0 0
  %1705 = vmatmul.mubr.bf16.gmra.mrb[0].mxu0 %v1417
  %v1706 = vpop.f32.mrb[0].mxu0
  %v1707 = vadd.f32 %v1413, %v1706
  %v1708 = vpop.f32.mrb[0].mxu0
  %v1709 = vadd.f32 %v1413, %v1708
  %v1710 = vpop.f32.mrb[0].mxu0
  %v1711 = vpop.f32.mrb[0].mxu0
  %1712 = vdwg.mxu0
  %1713 = vmatprep.subr.bf16.mxu0 %v1459
  %1714 = vmatpush1.bf16.msra.mxu0 %v1456
  %1715 = vmatprep.subr.bf16.mxu0 0
  %1716 = vmatpush1.bf16.msra.mxu0 0
  %1717 = vmatprep.subr.bf16.mxu0 0
  %1718 = vmatpush1.bf16.msra.mxu0 0
  %1719 = vmatprep.subr.bf16.mxu0 0
  %1720 = vmatpush1.bf16.msra.mxu0 0
  %1721 = vmatprep.subr.bf16.mxu0 0
  %1722 = vmatpush1.bf16.msra.mxu0 0
  %1723 = vmatprep.subr.bf16.mxu0 0
  %1724 = vmatpush1.bf16.msra.mxu0 0
  %1725 = vmatprep.subr.bf16.mxu0 0
  %1726 = vmatpush1.bf16.msra.mxu0 0
  %1727 = vmatprep.subr.bf16.mxu0 0
  %1728 = vmatpush1.bf16.msra.mxu0 0
  %1729 = vmatprep.subr.bf16.mxu0 0
  %1730 = vmatpush1.bf16.msra.mxu0 0
  %1731 = vmatprep.subr.bf16.mxu0 0
  %1732 = vmatpush1.bf16.msra.mxu0 0
  %1733 = vmatprep.subr.bf16.mxu0 0
  %1734 = vmatpush1.bf16.msra.mxu0 0
  %1735 = vmatprep.subr.bf16.mxu0 0
  %1736 = vmatpush1.bf16.msra.mxu0 0
  %1737 = vmatprep.subr.bf16.mxu0 0
  %1738 = vmatpush1.bf16.msra.mxu0 0
  %1739 = vmatprep.subr.bf16.mxu0 0
  %1740 = vmatpush1.bf16.msra.mxu0 0
  %1741 = vmatprep.subr.bf16.mxu0 0
  %1742 = vmatpush1.bf16.msra.mxu0 0
  %1743 = vmatprep.subr.bf16.mxu0 0
  %1744 = vmatpush1.bf16.msra.mxu0 0
  %1745 = vmatprep.mubr.bf16.mxu0 0
  %1746 = vmatmul.mubr.bf16.gmra.mrb[0].mxu0 %v1417
  %v1747 = vpop.f32.mrb[0].mxu0
  %v1748 = vadd.f32 %v1413, %v1747
  %v1749 = vpop.f32.mrb[0].mxu0
  %v1750 = vadd.f32 %v1413, %v1749
  %v1751 = vpop.f32.mrb[0].mxu0
  %v1752 = vpop.f32.mrb[0].mxu0
  %1753 = vdwg.mxu0
  %1754 = vmatprep.subr.bf16.mxu0 %v1465
  %1755 = vmatpush1.bf16.msra.mxu0 %v1462
  %1756 = vmatprep.subr.bf16.mxu0 0
  %1757 = vmatpush1.bf16.msra.mxu0 0
  %1758 = vmatprep.subr.bf16.mxu0 0
  %1759 = vmatpush1.bf16.msra.mxu0 0
  %1760 = vmatprep.subr.bf16.mxu0 0
  %1761 = vmatpush1.bf16.msra.mxu0 0
  %1762 = vmatprep.subr.bf16.mxu0 0
  %1763 = vmatpush1.bf16.msra.mxu0 0
  %1764 = vmatprep.subr.bf16.mxu0 0
  %1765 = vmatpush1.bf16.msra.mxu0 0
  %1766 = vmatprep.subr.bf16.mxu0 0
  %1767 = vmatpush1.bf16.msra.mxu0 0
  %1768 = vmatprep.subr.bf16.mxu0 0
  %1769 = vmatpush1.bf16.msra.mxu0 0
  %1770 = vmatprep.subr.bf16.mxu0 0
  %1771 = vmatpush1.bf16.msra.mxu0 0
  %1772 = vmatprep.subr.bf16.mxu0 0
  %1773 = vmatpush1.bf16.msra.mxu0 0
  %1774 = vmatprep.subr.bf16.mxu0 0
  %1775 = vmatpush1.bf16.msra.mxu0 0
  %1776 = vmatprep.subr.bf16.mxu0 0
  %1777 = vmatpush1.bf16.msra.mxu0 0
  %1778 = vmatprep.subr.bf16.mxu0 0
  %1779 = vmatpush1.bf16.msra.mxu0 0
  %1780 = vmatprep.subr.bf16.mxu0 0
  %1781 = vmatpush1.bf16.msra.mxu0 0
  %1782 = vmatprep.subr.bf16.mxu0 0
  %1783 = vmatpush1.bf16.msra.mxu0 0
  %1784 = vmatprep.subr.bf16.mxu0 0
  %1785 = vmatpush1.bf16.msra.mxu0 0
  %1786 = vmatprep.mubr.bf16.mxu0 0
  %1787 = vmatmul.mubr.bf16.gmra.mrb[0].mxu0 %v1417
  %v1788 = vpop.f32.mrb[0].mxu0
  %v1789 = vadd.f32 %v1413, %v1788
  %v1790 = vpop.f32.mrb[0].mxu0
  %v1791 = vadd.f32 %v1413, %v1790
  %v1792 = vpop.f32.mrb[0].mxu0
  %v1793 = vpop.f32.mrb[0].mxu0
  %1794 = vdwg.mxu0
  %v1795 = vld [vmem:[%s11] sm:$0xff]
  %v1796 = vld [vmem:[%s12] sm:$0xff]
  %v1797 = vadd.f32 %v1502, %v1504
  %v1798 = vadd.f32 %v1797, %v1543
  %v1799 = vadd.f32 %v1798, %v1545
  %v1800 = vadd.f32 %v1799, %v1584
  %v1801 = vadd.f32 %v1800, %v1586
  %v1802 = vadd.f32 %v1801, %v1625
  %v1803 = vadd.f32 %v1802, %v1627
  %v1804 = vadd.f32 %v1803, %v1666
  %v1805 = vadd.f32 %v1804, %v1668
  %v1806 = vadd.f32 %v1805, %v1707
  %v1807 = vadd.f32 %v1806, %v1709
  %v1808 = vadd.f32 %v1807, %v1748
  %v1809 = vadd.f32 %v1808, %v1750
  %v1810 = vadd.f32 %v1809, %v1789
  %v1811 = vadd.f32 %v1810, %v1791
  %1812 = vadd.xlane.f32.xlu0 %v1811
  %v1813 = vpop.xlane.xlu0 %1812
  %v1814 = vmul.f32 %v1813, 0.00048828125
  %v1815 = vsub.f32 %v1502, %v1814
  %v1816 = vsub.f32 %v1504, %v1814
  %v1817 = vsub.f32 %v1543, %v1814
  %v1818 = vsub.f32 %v1545, %v1814
  %v1819 = vsub.f32 %v1584, %v1814
  %v1820 = vsub.f32 %v1586, %v1814
  %v1821 = vsub.f32 %v1625, %v1814
  %v1822 = vsub.f32 %v1627, %v1814
  %v1823 = vsub.f32 %v1666, %v1814
  %v1824 = vsub.f32 %v1668, %v1814
  %v1825 = vsub.f32 %v1707, %v1814
  %v1826 = vsub.f32 %v1709, %v1814
  %v1827 = vsub.f32 %v1748, %v1814
  %v1828 = vsub.f32 %v1750, %v1814
  %v1829 = vsub.f32 %v1789, %v1814
  %v1830 = vsub.f32 %v1791, %v1814
  %v1831 = vmul.f32 %v1815, %v1815
  %v1832 = vmul.f32 %v1816, %v1816
  %v1833 = vmul.f32 %v1817, %v1817
  %v1834 = vmul.f32 %v1818, %v1818
  %v1835 = vmul.f32 %v1819, %v1819
  %v1836 = vmul.f32 %v1820, %v1820
  %v1837 = vmul.f32 %v1821, %v1821
  %v1838 = vmul.f32 %v1822, %v1822
  %v1839 = vmul.f32 %v1823, %v1823
  %v1840 = vmul.f32 %v1824, %v1824
  %v1841 = vmul.f32 %v1825, %v1825
  %v1842 = vmul.f32 %v1826, %v1826
  %v1843 = vmul.f32 %v1827, %v1827
  %v1844 = vmul.f32 %v1828, %v1828
  %v1845 = vmul.f32 %v1829, %v1829
  %v1846 = vmul.f32 %v1830, %v1830
  %v1847 = vadd.f32 %v1831, %v1832
  %v1848 = vadd.f32 %v1847, %v1833
  %v1849 = vadd.f32 %v1848, %v1834
  %v1850 = vadd.f32 %v1849, %v1835
  %v1851 = vadd.f32 %v1850, %v1836
  %v1852 = vadd.f32 %v1851, %v1837
  %v1853 = vadd.f32 %v1852, %v1838
  %v1854 = vadd.f32 %v1853, %v1839
  %v1855 = vadd.f32 %v1854, %v1840
  %v1856 = vadd.f32 %v1855, %v1841
  %v1857 = vadd.f32 %v1856, %v1842
  %v1858 = vadd.f32 %v1857, %v1843
  %v1859 = vadd.f32 %v1858, %v1844
  %v1860 = vadd.f32 %v1859, %v1845
  %v1861 = vadd.f32 %v1860, %v1846
  %1862 = vadd.xlane.f32.xlu0 %v1861
  %v1863 = vpop.xlane.xlu0 %1862
  %v1864 = vmul.f32 %v1863, 0.00048828125
  %v1865 = vadd.f32 %v1864, 1e-05
  %v1866 = vrsqrt.pop %v1865
  %v1867 = vmul.f32 %v1815, %v1866
  %v1868 = vmul.f32 %v1816, %v1866
  %v1869 = vmul.f32 %v1817, %v1866
  %v1870 = vmul.f32 %v1818, %v1866
  %v1871 = vmul.f32 %v1819, %v1866
  %v1872 = vmul.f32 %v1820, %v1866
  %v1873 = vmul.f32 %v1821, %v1866
  %v1874 = vmul.f32 %v1822, %v1866
  %v1875 = vmul.f32 %v1823, %v1866
  %v1876 = vmul.f32 %v1824, %v1866
  %v1877 = vmul.f32 %v1825, %v1866
  %v1878 = vmul.f32 %v1826, %v1866
  %v1879 = vmul.f32 %v1827, %v1866
  %v1880 = vmul.f32 %v1828, %v1866
  %v1881 = vmul.f32 %v1829, %v1866
  %v1882 = vmul.f32 %v1830, %v1866
  %1884 = vset.pattern.permute.xlu0 0
  %1885 = vperm.xlu0 %1884, %v1795
  %v1886 = vpop.permute.xlu0 %1885
  %v1888 = vmul.f32 %v1867, %v1886
  %v1889 = vmul.f32 %v1868, %v1886
  %v1890 = vmul.f32 %v1869, %v1886
  %v1891 = vmul.f32 %v1870, %v1886
  %v1892 = vmul.f32 %v1871, %v1886
  %v1893 = vmul.f32 %v1872, %v1886
  %v1894 = vmul.f32 %v1873, %v1886
  %v1895 = vmul.f32 %v1874, %v1886
  %v1896 = vmul.f32 %v1875, %v1886
  %v1897 = vmul.f32 %v1876, %v1886
  %v1898 = vmul.f32 %v1877, %v1886
  %v1899 = vmul.f32 %v1878, %v1886
  %v1900 = vmul.f32 %v1879, %v1886
  %v1901 = vmul.f32 %v1880, %v1886
  %v1902 = vmul.f32 %v1881, %v1886
  %v1903 = vmul.f32 %v1882, %v1886
  %1905 = vset.pattern.permute.xlu0 0
  %1906 = vperm.xlu0 %1905, %v1796
  %v1907 = vpop.permute.xlu0 %1906
  %v1909 = vadd.f32 %v1888, %v1907
  %v1910 = vadd.f32 %v1889, %v1907
  %v1911 = vadd.f32 %v1890, %v1907
  %v1912 = vadd.f32 %v1891, %v1907
  %v1913 = vadd.f32 %v1892, %v1907
  %v1914 = vadd.f32 %v1893, %v1907
  %v1915 = vadd.f32 %v1894, %v1907
  %v1916 = vadd.f32 %v1895, %v1907
  %v1917 = vadd.f32 %v1896, %v1907
  %v1918 = vadd.f32 %v1897, %v1907
  %v1919 = vadd.f32 %v1898, %v1907
  %v1920 = vadd.f32 %v1899, %v1907
  %v1921 = vadd.f32 %v1900, %v1907
  %v1922 = vadd.f32 %v1901, %v1907
  %v1923 = vadd.f32 %v1902, %v1907
  %v1924 = vadd.f32 %v1903, %v1907
  %v1925 = vmax.f32 %v1909, 0.0
  %v1926 = vmax.f32 %v1910, 0.0
  %v1927 = vmax.f32 %v1911, 0.0
  %v1928 = vmax.f32 %v1912, 0.0
  %v1929 = vmax.f32 %v1913, 0.0
  %v1930 = vmax.f32 %v1914, 0.0
  %v1931 = vmax.f32 %v1915, 0.0
  %v1932 = vmax.f32 %v1916, 0.0
  %v1933 = vmax.f32 %v1917, 0.0
  %v1934 = vmax.f32 %v1918, 0.0
  %v1935 = vmax.f32 %v1919, 0.0
  %v1936 = vmax.f32 %v1920, 0.0
  %v1937 = vmax.f32 %v1921, 0.0
  %v1938 = vmax.f32 %v1922, 0.0
  %v1939 = vmax.f32 %v1923, 0.0
  %v1940 = vmax.f32 %v1924, 0.0
  %1941 = vst [vmem:[%s15] sm:$0xff] %v1925
  %1942 = vst [vmem:[%s15 + $0x8] sm:$0xff] %v1926
  %1943 = vst [vmem:[%s15 + $0x10] sm:$0xff] %v1927
  %1944 = vst [vmem:[%s15 + $0x18] sm:$0xff] %v1928
  %1945 = vst [vmem:[%s15 + $0x20] sm:$0xff] %v1929
  %1946 = vst [vmem:[%s15 + $0x28] sm:$0xff] %v1930
  %1947 = vst [vmem:[%s15 + $0x30] sm:$0xff] %v1931
  %1948 = vst [vmem:[%s15 + $0x38] sm:$0xff] %v1932
  %1949 = vst [vmem:[%s15 + $0x40] sm:$0xff] %v1933
  %1950 = vst [vmem:[%s15 + $0x48] sm:$0xff] %v1934
  %1951 = vst [vmem:[%s15 + $0x50] sm:$0xff] %v1935
  %1952 = vst [vmem:[%s15 + $0x58] sm:$0xff] %v1936
  %1953 = vst [vmem:[%s15 + $0x60] sm:$0xff] %v1937
  %1954 = vst [vmem:[%s15 + $0x68] sm:$0xff] %v1938
  %1955 = vst [vmem:[%s15 + $0x70] sm:$0xff] %v1939
  %1956 = vst [vmem:[%s15 + $0x78] sm:$0xff] %v1940
  // Predicated region
  $region62: #{decoder_block_forward.1} parent=0 // pred_check
    _
  $region63: #{decoder_block_forward.1} parent=0 // pred_check_branch
    %1958 = sbr.rel (0) target = $region65
  $region64: #{decoder_block_forward.1} parent=0 // pred_region
    _
  $region65: #{decoder_block_forward.1} parent=0 // pred_fallthru
    _
  // Predicated region
  $region66: #{decoder_block_forward.1} parent=0 // pred_check
    _
  $region67: #{decoder_block_forward.1} parent=0 // pred_check_branch
    %1960 = sbr.rel (0) target = $region69
  $region68: #{decoder_block_forward.1} parent=0 // pred_region
    _
  $region69: #{decoder_block_forward.1} parent=0 // pred_fallthru
    _

</llo_original>
